<compile_context>
chip_gen: v7x
topology: tpu7x:2x2x1
jax: 0.10.0
libtpu: 0.0.40
codegen_flags: <defaults>
</compile_context>

<pallas_src>
import math

import jax
import jax.numpy as jnp
from jax import lax
from jax.experimental import pallas as pl


HEAD_PAD = 128  # lane-dense head slab width: [token(2) | y | x | t | zeros]


# ----------------------------------------------------------------------------
# Fused Pallas kernel
# ----------------------------------------------------------------------------
def fused_clipgaze_kernel(qf_ref, task_ref, mem_ref, qpos_ref, ppos_ref,
                          wff_ref, bff_ref, wtask_ref, btask_ref,
                          w1_ref, b1_ref, w2_ref, b2_ref,
                          wh_ref, bh_ref, out_ref):
    """firstfix/task linears + decoder-block stand-in + fused heads.

    qf   : (B, D)   gathered queryfix embeddings
    task : (B, T)   task conditioning
    mem  : (B, S, D) patch memory
    qpos : (L, D), ppos : (S, D)
    weights are bf16, biases f32 (shape (1, N))
    out  : (B*L, HEAD_PAD) lane-dense padded head slab
    """
    B, D = qf_ref.shape
    L = qpos_ref.shape[0]
    scale = 1.0 / math.sqrt(D)

    def bf16(x):
        return x.astype(jnp.bfloat16)

    def _dot(a, b):          # a @ b   — bf16 MXU operands, f32 accumulation
        return jnp.dot(bf16(a), bf16(b), preferred_element_type=jnp.float32)

    def _dot_nt(a, b):       # a @ b.T — contraction on last dims, no transpose
        return lax.dot_general(bf16(a), bf16(b), (((1,), (1,)), ((), ())),
                               preferred_element_type=jnp.float32)

    def _softmax(s):
        m = jnp.max(s, axis=-1, keepdims=True)
        e = jnp.exp(s - m)
        denom = jnp.sum(e, axis=-1, keepdims=True)
        return e * pl.reciprocal(denom, approx=True)

    # --- firstfix & task linears, batched over the B rows --------------------
    first_all = _dot(qf_ref[...], wff_ref[...]) + bff_ref[...]        # (B, D)
    task_all = _dot(task_ref[...], wtask_ref[...]) + btask_ref[...]   # (B, D)

    qpos = qpos_ref[...]                                              # (L, D)
    ppos = ppos_ref[...]                                              # (S, D)
    mem_all = mem_ref[...].astype(jnp.float32)                        # (B, S, D)

    # --- decoder-block stand-in, tiny static batch unrolled in Python --------
    # TODO(synk): the real `transformer` is an injected external module with
    # unspecified architecture; this is a deterministic single-layer,
    # single-head decoder stand-in consuming the same inputs
    # (tgt, patch memory, querypos_embed, patchpos_embed, task).
    row_idx = lax.broadcasted_iota(jnp.int32, (L, D), 0)
    tgt_list = []
    for b in range(B):
        first_b = first_all[b:b + 1, :]                               # (1, D)
        task_b = task_all[b:b + 1, :]                                 # (1, D)
        # tgt_input: zeros with row 0 = firstfix(queryfix gather), + task cond
        tgt = jnp.where(row_idx == 0, first_b, 0.0) + task_b          # (L, D)

        # self-attention over the query sequence (query positions added)
        q = tgt + qpos
        attn = _softmax(_dot_nt(q, q) * scale)                        # (L, L)
        tgt = tgt + _dot(attn, tgt)

        # cross-attention to patch memory (patch positions added to keys)
        mem_b = mem_all[b]                                            # (S, D)
        q2 = tgt + qpos
        kmem = mem_b + ppos
        attn2 = _softmax(_dot_nt(q2, kmem) * scale)                   # (L, S)
        tgt = tgt + _dot(attn2, mem_b)
        tgt_list.append(tgt)

    # --- stacked FFN + heads: one MXU push over all B*L rows ------------------
    tgt_all = jnp.concatenate(tgt_list, axis=0)                       # (B*L, D)
    h = jnp.maximum(_dot(tgt_all, w1_ref[...]) + b1_ref[...], 0.0)
    tgt_all = tgt_all + _dot(h, w2_ref[...]) + b2_ref[...]

    # nn.Dropout in eval mode is identity (inference semantics).
    z = _dot(tgt_all, wh_ref[...]) + bh_ref[...]                      # (B*L, 128)

    col = lax.broadcasted_iota(jnp.int32, z.shape, 1)
    is_logit = col < 2
    zm = jnp.where(is_logit, z, -jnp.inf)
    m = jnp.max(zm, axis=-1, keepdims=True)
    lse = m + jnp.log(jnp.sum(jnp.exp(zm - m), axis=-1, keepdims=True))
    # cols 0:2 -> LogSoftmax(token_predictor); cols 2:5 -> relu(generators);
    # cols >= 5 carry zero-padded weights/bias -> relu(0) = 0.
    out_ref[...] = jnp.where(is_logit, z - lse, jnp.maximum(z, 0.0))


# ----------------------------------------------------------------------------
# Pallas wrapper (single launch, lane-dense padded output)
# ----------------------------------------------------------------------------
def fused_clipgaze_call(qf, task, mem_bsd, params):
    B, D = qf.shape
    L = params["querypos_embed"].shape[0]
    Dff = params["W_ffn1"].shape[1]

    # pad the packed heads weight/bias to 128 output lanes (zero columns)
    W_heads = params["W_heads"]                                       # (D, 5)
    b_heads = params["b_heads"]                                       # (5,)
    wh = jnp.zeros((D, HEAD_PAD), jnp.float32).at[:, :W_heads.shape[1]].set(W_heads)
    bh = jnp.zeros((1, HEAD_PAD), jnp.float32).at[0, :b_heads.shape[0]].set(b_heads)

    args = (
        qf.astype(jnp.float32),
        task.astype(jnp.float32),
        mem_bsd.astype(jnp.float32),
        params["querypos_embed"].astype(jnp.float32),
        params["patchpos_mem"].astype(jnp.float32),
        params["W_firstfix"].astype(jnp.bfloat16),
        params["b_firstfix"].reshape(1, D).astype(jnp.float32),
        params["W_task"].astype(jnp.bfloat16),
        params["b_task"].reshape(1, D).astype(jnp.float32),
        params["W_ffn1"].astype(jnp.bfloat16),
        params["b_ffn1"].reshape(1, Dff).astype(jnp.float32),
        params["W_ffn2"].astype(jnp.bfloat16),
        params["b_ffn2"].reshape(1, D).astype(jnp.float32),
        wh.astype(jnp.bfloat16),
        bh,
    )
    return pl.pallas_call(
        fused_clipgaze_kernel,
        out_shape=jax.ShapeDtypeStruct((B * L, HEAD_PAD), jnp.float32),
    )(*args)


# ----------------------------------------------------------------------------
# Plain-JAX glue: sine positional embeddings (parameter setup, DETR-style)
# ----------------------------------------------------------------------------
def sine_pos_embed_2d(H, W, hidden_dim, temperature=10000.0, flatten=True):
    num_pos_feats = hidden_dim // 2
    scale = 2.0 * math.pi
    eps = 1e-6
    y_embed = jnp.arange(1, H + 1, dtype=jnp.float32)[:, None] * jnp.ones((1, W))
    x_embed = jnp.ones((H, 1)) * jnp.arange(1, W + 1, dtype=jnp.float32)[None, :]
    y_embed = y_embed / (y_embed[-1:, :] + eps) * scale       # normalize=True
    x_embed = x_embed / (x_embed[:, -1:] + eps) * scale
    dim_t = jnp.power(
        temperature,
        2.0 * (jnp.arange(num_pos_feats) // 2).astype(jnp.float32)
        / num_pos_feats)
    pos_x = x_embed[:, :, None] / dim_t
    pos_y = y_embed[:, :, None] / dim_t
    pos_x = jnp.stack([jnp.sin(pos_x[:, :, 0::2]),
                       jnp.cos(pos_x[:, :, 1::2])], axis=3).reshape(H, W, -1)
    pos_y = jnp.stack([jnp.sin(pos_y[:, :, 0::2]),
                       jnp.cos(pos_y[:, :, 1::2])], axis=3).reshape(H, W, -1)
    pos = jnp.concatenate([pos_y, pos_x], axis=2)             # (H, W, hidden)
    if flatten:
        pos = pos.reshape(H * W, hidden_dim)
    return pos.astype(jnp.float32)


# ----------------------------------------------------------------------------
# CLIPGaze forward
# ----------------------------------------------------------------------------
def clipgaze_forward(src_nested, tgt_idx, task, params, cfg):
    L = cfg["max_len"]

    # --- replicate the nested-list stacking glue from PyTorch ---------------
    a = len(src_nested)                       # batch
    b = len(src_nested[0])                    # feature levels
    activations = [
        jnp.transpose(
            jnp.stack([src_nested[i][j][0] for i in range(a)]), (1, 0, 2))
        for j in range(b)
    ]                                         # each: (S_j, B, D)
    B = task.shape[0]

    # --- queryfix gather (plain-JAX gather), memory stacking -----------------
    qf = params["queryfix_embed"][tgt_idx[:, 0], tgt_idx[:, 1], :]    # (B, D)
    mem = jnp.concatenate(activations, axis=0)                        # (S, B, D)
    mem_bsd = jnp.transpose(mem, (1, 0, 2))                           # (B, S, D)

    # --- single fused Pallas launch -------------------------------------------
    slab = fused_clipgaze_call(qf, task, mem_bsd, params)             # (B*L, 128)
    slab = slab.reshape(B, L, HEAD_PAD).transpose(1, 0, 2)            # (L, B, 128)

    return (slab[..., 0:2],     # LogSoftmax(token_predictor)   (L, B, 2)
            slab[..., 2:3],     # relu(generator_y_mu)          (L, B, 1)
            slab[..., 3:4],     # relu(generator_x_mu)          (L, B, 1)
            slab[..., 4:5])     # relu(generator_t_mu)          (L, B, 1)


# ----------------------------------------------------------------------------
# Main
# ----------------------------------------------------------------------------
if __name__ == "__main__":
    # small config
    B = 2                      # batch
    D = 32                     # transformer.d_model (hidden_dim)
    L = 7                      # max_len
    DFF = 64                   # FFN dim of the stand-in decoder block
    spatial_dim = (2, 4)       # patch grid -> S = 8 tokens per level
    n_levels = 2               # number of feature levels in `src`
    project_num = 4            # queryfix grid = (8, 16)
    T_DIM = 16                 # task embedding width
    S = spatial_dim[0] * spatial_dim[1]

    key = jax.random.PRNGKey(0)
    ks = jax.random.split(key, 16)

    def init(k, shape):
        return 0.02 * jax.random.normal(k, shape, dtype=jnp.float32)

    # heads packed as one (D, 5) matrix: [token_predictor(2) | y | x | t]
    W_heads = jnp.concatenate(
        [init(ks[0], (D, 2)), init(ks[1], (D, 1)),
         init(ks[2], (D, 1)), init(ks[3], (D, 1))], axis=1)
    b_heads = jnp.concatenate(
        [init(ks[4], (2,)), init(ks[5], (1,)),
         init(ks[6], (1,)), init(ks[7], (1,))], axis=0)

    params = {
        "queryfix_embed": sine_pos_embed_2d(
            spatial_dim[0] * project_num, spatial_dim[1] * project_num, D,
            flatten=False),                                   # (8, 16, D)
        "patchpos_mem": jnp.tile(
            sine_pos_embed_2d(spatial_dim[0], spatial_dim[1], D, flatten=True),
            (n_levels, 1)),                                   # (S_total, D)
        "querypos_embed": init(ks[8], (L, D)),
        "W_firstfix": init(ks[9], (D, D)),
        "b_firstfix": jnp.zeros((D,), jnp.float32),
        "W_task": init(ks[10], (T_DIM, D)),
        "b_task": jnp.zeros((D,), jnp.float32),
        "W_ffn1": init(ks[11], (D, DFF)),
        "b_ffn1": jnp.zeros((DFF,), jnp.float32),
        "W_ffn2": init(ks[12], (DFF, D)),
        "b_ffn2": jnp.zeros((D,), jnp.float32),
        "W_heads": W_heads,
        "b_heads": b_heads,
    }

    cfg = {"max_len": L, "hidden_dim": D}

    # inputs: nested list src[i][j] of shape (1, S, D), tgt indices, task
    src_keys = jax.random.split(ks[13], B * n_levels)
    src = [[jax.random.normal(src_keys[i * n_levels + j], (1, S, D),
                              dtype=jnp.float32)
            for j in range(n_levels)] for i in range(B)]
    tgt_idx = jnp.array([[1, 3], [5, 10]], dtype=jnp.int32)   # (B, 2) grid coords
    task = jax.random.normal(ks[14], (B, T_DIM), dtype=jnp.float32)

    out = clipgaze_forward(src, tgt_idx, task, params, cfg)
    jax.block_until_ready(out)

    tok, y_mu, x_mu, t_mu = out
    assert tok.shape == (L, B, 2)
    assert y_mu.shape == (L, B, 1) and x_mu.shape == (L, B, 1)
    assert t_mu.shape == (L, B, 1)
    assert bool(jnp.all(jnp.isfinite(tok)))
    print("KERNEL_OK")
</pallas_src>

<mosaic_0001>
module attributes {stable_mosaic.version = 11 : i64} {
  func.func @fused_clipgaze_kernel(%arg0: memref<2x32xf32, #tpu.memory_space<vmem>>, %arg1: memref<2x16xf32, #tpu.memory_space<vmem>>, %arg2: memref<2x16x32xf32, #tpu.memory_space<vmem>>, %arg3: memref<7x32xf32, #tpu.memory_space<vmem>>, %arg4: memref<16x32xf32, #tpu.memory_space<vmem>>, %arg5: memref<32x32xbf16, #tpu.memory_space<vmem>>, %arg6: memref<1x32xf32, #tpu.memory_space<vmem>>, %arg7: memref<16x32xbf16, #tpu.memory_space<vmem>>, %arg8: memref<1x32xf32, #tpu.memory_space<vmem>>, %arg9: memref<32x64xbf16, #tpu.memory_space<vmem>>, %arg10: memref<1x64xf32, #tpu.memory_space<vmem>>, %arg11: memref<64x32xbf16, #tpu.memory_space<vmem>>, %arg12: memref<1x32xf32, #tpu.memory_space<vmem>>, %arg13: memref<32x128xbf16, #tpu.memory_space<vmem>>, %arg14: memref<1x128xf32, #tpu.memory_space<vmem>>, %arg15: memref<14x128xf32, #tpu.memory_space<vmem>>) attributes {dimension_semantics = [], scalar_prefetch = 0 : i64, scratch_operands = 0 : i64, tpu.core_type = #tpu.core_type<tc>} {
    %c0 = arith.constant 0 : index
    %c0_0 = arith.constant 0 : index
    %0 = vector.load %arg0[%c0, %c0_0] : memref<2x32xf32, #tpu.memory_space<vmem>>, vector<2x32xf32>
    %c0_1 = arith.constant 0 : index
    %c0_2 = arith.constant 0 : index
    %1 = vector.load %arg5[%c0_1, %c0_2] : memref<32x32xbf16, #tpu.memory_space<vmem>>, vector<32x32xbf16>
    %2 = arith.truncf %0 : vector<2x32xf32> to vector<2x32xbf16>
    %cst = arith.constant dense<0.000000e+00> : vector<2x32xf32>
    %3 = tpu.matmul %2, %1, %cst {dimension_numbers = #tpu.dot_dimension_numbers<[1], [0], [0], [1], [0, 0, 1, 1], [], []>} : vector<2x32xbf16>, vector<32x32xbf16>, vector<2x32xf32> -> vector<2x32xf32>
    %c0_3 = arith.constant 0 : index
    %c0_4 = arith.constant 0 : index
    %4 = vector.load %arg6[%c0_3, %c0_4] : memref<1x32xf32, #tpu.memory_space<vmem>>, vector<1x32xf32>
    %5 = vector.broadcast %4 : vector<1x32xf32> to vector<2x32xf32>
    %6 = arith.addf %3, %5 : vector<2x32xf32>
    %c0_5 = arith.constant 0 : index
    %c0_6 = arith.constant 0 : index
    %7 = vector.load %arg1[%c0_5, %c0_6] : memref<2x16xf32, #tpu.memory_space<vmem>>, vector<2x16xf32>
    %c0_7 = arith.constant 0 : index
    %c0_8 = arith.constant 0 : index
    %8 = vector.load %arg7[%c0_7, %c0_8] : memref<16x32xbf16, #tpu.memory_space<vmem>>, vector<16x32xbf16>
    %9 = arith.truncf %7 : vector<2x16xf32> to vector<2x16xbf16>
    %cst_9 = arith.constant dense<0.000000e+00> : vector<2x32xf32>
    %10 = tpu.matmul %9, %8, %cst_9 {dimension_numbers = #tpu.dot_dimension_numbers<[1], [0], [0], [1], [0, 0, 1, 1], [], []>} : vector<2x16xbf16>, vector<16x32xbf16>, vector<2x32xf32> -> vector<2x32xf32>
    %c0_10 = arith.constant 0 : index
    %c0_11 = arith.constant 0 : index
    %11 = vector.load %arg8[%c0_10, %c0_11] : memref<1x32xf32, #tpu.memory_space<vmem>>, vector<1x32xf32>
    %12 = vector.broadcast %11 : vector<1x32xf32> to vector<2x32xf32>
    %13 = arith.addf %10, %12 : vector<2x32xf32>
    %c0_12 = arith.constant 0 : index
    %c0_13 = arith.constant 0 : index
    %14 = vector.load %arg3[%c0_12, %c0_13] : memref<7x32xf32, #tpu.memory_space<vmem>>, vector<7x32xf32>
    %c0_14 = arith.constant 0 : index
    %c0_15 = arith.constant 0 : index
    %15 = vector.load %arg4[%c0_14, %c0_15] : memref<16x32xf32, #tpu.memory_space<vmem>>, vector<16x32xf32>
    %c0_16 = arith.constant 0 : index
    %c0_17 = arith.constant 0 : index
    %c0_18 = arith.constant 0 : index
    %16 = vector.load %arg2[%c0_16, %c0_17, %c0_18] : memref<2x16x32xf32, #tpu.memory_space<vmem>>, vector<2x16x32xf32>
    %17 = tpu.iota {dimensions = array<i32: 0>} : vector<7x32xi32>
    %18 = vector.extract_strided_slice %6 {offsets = [0, 0], sizes = [1, 32], strides = [1, 1]} : vector<2x32xf32> to vector<1x32xf32>
    %19 = vector.extract_strided_slice %13 {offsets = [0, 0], sizes = [1, 32], strides = [1, 1]} : vector<2x32xf32> to vector<1x32xf32>
    %c0_i32 = arith.constant 0 : i32
    %20 = vector.broadcast %c0_i32 : i32 to vector<7x32xi32>
    %21 = arith.cmpi eq, %17, %20 : vector<7x32xi32>
    %cst_19 = arith.constant 0.000000e+00 : f32
    %22 = vector.shape_cast %18 : vector<1x32xf32> to vector<1x32xf32>
    %23 = vector.broadcast %22 : vector<1x32xf32> to vector<7x32xf32>
    %24 = vector.broadcast %cst_19 : f32 to vector<7x32xf32>
    %25 = arith.select %21, %23, %24 : vector<7x32xi1>, vector<7x32xf32>
    %26 = vector.broadcast %19 : vector<1x32xf32> to vector<7x32xf32>
    %27 = arith.addf %25, %26 : vector<7x32xf32>
    %28 = arith.addf %27, %14 : vector<7x32xf32>
    %29 = arith.truncf %28 : vector<7x32xf32> to vector<7x32xbf16>
    %30 = arith.truncf %28 : vector<7x32xf32> to vector<7x32xbf16>
    %cst_20 = arith.constant dense<0.000000e+00> : vector<7x7xf32>
    %31 = tpu.matmul %29, %30, %cst_20 {dimension_numbers = #tpu.dot_dimension_numbers<[1], [1], [0], [0], [0, 0, 1, 0], [], []>} : vector<7x32xbf16>, vector<7x32xbf16>, vector<7x7xf32> -> vector<7x7xf32>
    %cst_21 = arith.constant 0.176776692 : f32
    %32 = vector.broadcast %cst_21 : f32 to vector<7x7xf32>
    %33 = arith.mulf %31, %32 : vector<7x7xf32>
    %cst_22 = arith.constant dense<0xFF800000> : vector<7xf32>
    %34 = vector.multi_reduction <maximumf>, %33, %cst_22 [1] : vector<7x7xf32> to vector<7xf32>
    %35 = vector.shape_cast %34 : vector<7xf32> to vector<7x1xf32>
    %36 = vector.broadcast %35 : vector<7x1xf32> to vector<7x7xf32>
    %37 = arith.subf %33, %36 : vector<7x7xf32>
    %38 = math.exp %37 : vector<7x7xf32>
    %cst_23 = arith.constant dense<0.000000e+00> : vector<7xf32>
    %39 = vector.multi_reduction <add>, %38, %cst_23 [1] : vector<7x7xf32> to vector<7xf32>
    %40 = vector.shape_cast %39 : vector<7xf32> to vector<7x1xf32>
    %41 = tpu.reciprocal %40 {approx = true} : vector<7x1xf32> -> vector<7x1xf32>
    %42 = vector.broadcast %41 : vector<7x1xf32> to vector<7x7xf32>
    %43 = arith.mulf %38, %42 : vector<7x7xf32>
    %44 = arith.truncf %43 : vector<7x7xf32> to vector<7x7xbf16>
    %45 = arith.truncf %27 : vector<7x32xf32> to vector<7x32xbf16>
    %cst_24 = arith.constant dense<0.000000e+00> : vector<7x32xf32>
    %46 = tpu.matmul %44, %45, %cst_24 {dimension_numbers = #tpu.dot_dimension_numbers<[1], [0], [0], [1], [0, 0, 1, 1], [], []>} : vector<7x7xbf16>, vector<7x32xbf16>, vector<7x32xf32> -> vector<7x32xf32>
    %47 = arith.addf %27, %46 : vector<7x32xf32>
    %48 = vector.extract_strided_slice %16 {offsets = [0, 0, 0], sizes = [1, 16, 32], strides = [1, 1, 1]} : vector<2x16x32xf32> to vector<1x16x32xf32>
    %49 = vector.shape_cast %48 : vector<1x16x32xf32> to vector<16x32xf32>
    %50 = arith.addf %47, %14 : vector<7x32xf32>
    %51 = arith.addf %49, %15 : vector<16x32xf32>
    %52 = arith.truncf %50 : vector<7x32xf32> to vector<7x32xbf16>
    %53 = arith.truncf %51 : vector<16x32xf32> to vector<16x32xbf16>
    %cst_25 = arith.constant dense<0.000000e+00> : vector<7x16xf32>
    %54 = tpu.matmul %52, %53, %cst_25 {dimension_numbers = #tpu.dot_dimension_numbers<[1], [1], [0], [0], [0, 0, 1, 0], [], []>} : vector<7x32xbf16>, vector<16x32xbf16>, vector<7x16xf32> -> vector<7x16xf32>
    %cst_26 = arith.constant 0.176776692 : f32
    %55 = vector.broadcast %cst_26 : f32 to vector<7x16xf32>
    %56 = arith.mulf %54, %55 : vector<7x16xf32>
    %cst_27 = arith.constant dense<0xFF800000> : vector<7xf32>
    %57 = vector.multi_reduction <maximumf>, %56, %cst_27 [1] : vector<7x16xf32> to vector<7xf32>
    %58 = vector.shape_cast %57 : vector<7xf32> to vector<7x1xf32>
    %59 = vector.broadcast %58 : vector<7x1xf32> to vector<7x16xf32>
    %60 = arith.subf %56, %59 : vector<7x16xf32>
    %61 = math.exp %60 : vector<7x16xf32>
    %cst_28 = arith.constant dense<0.000000e+00> : vector<7xf32>
    %62 = vector.multi_reduction <add>, %61, %cst_28 [1] : vector<7x16xf32> to vector<7xf32>
    %63 = vector.shape_cast %62 : vector<7xf32> to vector<7x1xf32>
    %64 = tpu.reciprocal %63 {approx = true} : vector<7x1xf32> -> vector<7x1xf32>
    %65 = vector.broadcast %64 : vector<7x1xf32> to vector<7x16xf32>
    %66 = arith.mulf %61, %65 : vector<7x16xf32>
    %67 = arith.truncf %66 : vector<7x16xf32> to vector<7x16xbf16>
    %68 = arith.truncf %49 : vector<16x32xf32> to vector<16x32xbf16>
    %cst_29 = arith.constant dense<0.000000e+00> : vector<7x32xf32>
    %69 = tpu.matmul %67, %68, %cst_29 {dimension_numbers = #tpu.dot_dimension_numbers<[1], [0], [0], [1], [0, 0, 1, 1], [], []>} : vector<7x16xbf16>, vector<16x32xbf16>, vector<7x32xf32> -> vector<7x32xf32>
    %70 = arith.addf %47, %69 : vector<7x32xf32>
    %71 = vector.extract_strided_slice %6 {offsets = [1, 0], sizes = [1, 32], strides = [1, 1]} : vector<2x32xf32> to vector<1x32xf32>
    %72 = vector.extract_strided_slice %13 {offsets = [1, 0], sizes = [1, 32], strides = [1, 1]} : vector<2x32xf32> to vector<1x32xf32>
    %c0_i32_30 = arith.constant 0 : i32
    %73 = vector.broadcast %c0_i32_30 : i32 to vector<7x32xi32>
    %74 = arith.cmpi eq, %17, %73 : vector<7x32xi32>
    %cst_31 = arith.constant 0.000000e+00 : f32
    %75 = vector.shape_cast %71 : vector<1x32xf32> to vector<1x32xf32>
    %76 = vector.broadcast %75 : vector<1x32xf32> to vector<7x32xf32>
    %77 = vector.broadcast %cst_31 : f32 to vector<7x32xf32>
    %78 = arith.select %74, %76, %77 : vector<7x32xi1>, vector<7x32xf32>
    %79 = vector.broadcast %72 : vector<1x32xf32> to vector<7x32xf32>
    %80 = arith.addf %78, %79 : vector<7x32xf32>
    %81 = arith.addf %80, %14 : vector<7x32xf32>
    %82 = arith.truncf %81 : vector<7x32xf32> to vector<7x32xbf16>
    %83 = arith.truncf %81 : vector<7x32xf32> to vector<7x32xbf16>
    %cst_32 = arith.constant dense<0.000000e+00> : vector<7x7xf32>
    %84 = tpu.matmul %82, %83, %cst_32 {dimension_numbers = #tpu.dot_dimension_numbers<[1], [1], [0], [0], [0, 0, 1, 0], [], []>} : vector<7x32xbf16>, vector<7x32xbf16>, vector<7x7xf32> -> vector<7x7xf32>
    %cst_33 = arith.constant 0.176776692 : f32
    %85 = vector.broadcast %cst_33 : f32 to vector<7x7xf32>
    %86 = arith.mulf %84, %85 : vector<7x7xf32>
    %cst_34 = arith.constant dense<0xFF800000> : vector<7xf32>
    %87 = vector.multi_reduction <maximumf>, %86, %cst_34 [1] : vector<7x7xf32> to vector<7xf32>
    %88 = vector.shape_cast %87 : vector<7xf32> to vector<7x1xf32>
    %89 = vector.broadcast %88 : vector<7x1xf32> to vector<7x7xf32>
    %90 = arith.subf %86, %89 : vector<7x7xf32>
    %91 = math.exp %90 : vector<7x7xf32>
    %cst_35 = arith.constant dense<0.000000e+00> : vector<7xf32>
    %92 = vector.multi_reduction <add>, %91, %cst_35 [1] : vector<7x7xf32> to vector<7xf32>
    %93 = vector.shape_cast %92 : vector<7xf32> to vector<7x1xf32>
    %94 = tpu.reciprocal %93 {approx = true} : vector<7x1xf32> -> vector<7x1xf32>
    %95 = vector.broadcast %94 : vector<7x1xf32> to vector<7x7xf32>
    %96 = arith.mulf %91, %95 : vector<7x7xf32>
    %97 = arith.truncf %96 : vector<7x7xf32> to vector<7x7xbf16>
    %98 = arith.truncf %80 : vector<7x32xf32> to vector<7x32xbf16>
    %cst_36 = arith.constant dense<0.000000e+00> : vector<7x32xf32>
    %99 = tpu.matmul %97, %98, %cst_36 {dimension_numbers = #tpu.dot_dimension_numbers<[1], [0], [0], [1], [0, 0, 1, 1], [], []>} : vector<7x7xbf16>, vector<7x32xbf16>, vector<7x32xf32> -> vector<7x32xf32>
    %100 = arith.addf %80, %99 : vector<7x32xf32>
    %101 = vector.extract_strided_slice %16 {offsets = [1, 0, 0], sizes = [1, 16, 32], strides = [1, 1, 1]} : vector<2x16x32xf32> to vector<1x16x32xf32>
    %102 = vector.shape_cast %101 : vector<1x16x32xf32> to vector<16x32xf32>
    %103 = arith.addf %100, %14 : vector<7x32xf32>
    %104 = arith.addf %102, %15 : vector<16x32xf32>
    %105 = arith.truncf %103 : vector<7x32xf32> to vector<7x32xbf16>
    %106 = arith.truncf %104 : vector<16x32xf32> to vector<16x32xbf16>
    %cst_37 = arith.constant dense<0.000000e+00> : vector<7x16xf32>
    %107 = tpu.matmul %105, %106, %cst_37 {dimension_numbers = #tpu.dot_dimension_numbers<[1], [1], [0], [0], [0, 0, 1, 0], [], []>} : vector<7x32xbf16>, vector<16x32xbf16>, vector<7x16xf32> -> vector<7x16xf32>
    %cst_38 = arith.constant 0.176776692 : f32
    %108 = vector.broadcast %cst_38 : f32 to vector<7x16xf32>
    %109 = arith.mulf %107, %108 : vector<7x16xf32>
    %cst_39 = arith.constant dense<0xFF800000> : vector<7xf32>
    %110 = vector.multi_reduction <maximumf>, %109, %cst_39 [1] : vector<7x16xf32> to vector<7xf32>
    %111 = vector.shape_cast %110 : vector<7xf32> to vector<7x1xf32>
    %112 = vector.broadcast %111 : vector<7x1xf32> to vector<7x16xf32>
    %113 = arith.subf %109, %112 : vector<7x16xf32>
    %114 = math.exp %113 : vector<7x16xf32>
    %cst_40 = arith.constant dense<0.000000e+00> : vector<7xf32>
    %115 = vector.multi_reduction <add>, %114, %cst_40 [1] : vector<7x16xf32> to vector<7xf32>
    %116 = vector.shape_cast %115 : vector<7xf32> to vector<7x1xf32>
    %117 = tpu.reciprocal %116 {approx = true} : vector<7x1xf32> -> vector<7x1xf32>
    %118 = vector.broadcast %117 : vector<7x1xf32> to vector<7x16xf32>
    %119 = arith.mulf %114, %118 : vector<7x16xf32>
    %120 = arith.truncf %119 : vector<7x16xf32> to vector<7x16xbf16>
    %121 = arith.truncf %102 : vector<16x32xf32> to vector<16x32xbf16>
    %cst_41 = arith.constant dense<0.000000e+00> : vector<7x32xf32>
    %122 = tpu.matmul %120, %121, %cst_41 {dimension_numbers = #tpu.dot_dimension_numbers<[1], [0], [0], [1], [0, 0, 1, 1], [], []>} : vector<7x16xbf16>, vector<16x32xbf16>, vector<7x32xf32> -> vector<7x32xf32>
    %123 = arith.addf %100, %122 : vector<7x32xf32>
    %124 = tpu.concatenate %70, %123 in 0 : vector<7x32xf32>, vector<7x32xf32> -> vector<14x32xf32>
    %c0_42 = arith.constant 0 : index
    %c0_43 = arith.constant 0 : index
    %125 = vector.load %arg9[%c0_42, %c0_43] : memref<32x64xbf16, #tpu.memory_space<vmem>>, vector<32x64xbf16>
    %126 = arith.truncf %124 : vector<14x32xf32> to vector<14x32xbf16>
    %cst_44 = arith.constant dense<0.000000e+00> : vector<14x64xf32>
    %127 = tpu.matmul %126, %125, %cst_44 {dimension_numbers = #tpu.dot_dimension_numbers<[1], [0], [0], [1], [0, 0, 1, 1], [], []>} : vector<14x32xbf16>, vector<32x64xbf16>, vector<14x64xf32> -> vector<14x64xf32>
    %c0_45 = arith.constant 0 : index
    %c0_46 = arith.constant 0 : index
    %128 = vector.load %arg10[%c0_45, %c0_46] : memref<1x64xf32, #tpu.memory_space<vmem>>, vector<1x64xf32>
    %129 = vector.broadcast %128 : vector<1x64xf32> to vector<14x64xf32>
    %130 = arith.addf %127, %129 : vector<14x64xf32>
    %cst_47 = arith.constant 0.000000e+00 : f32
    %131 = vector.broadcast %cst_47 : f32 to vector<14x64xf32>
    %132 = arith.maximumf %130, %131 : vector<14x64xf32>
    %c0_48 = arith.constant 0 : index
    %c0_49 = arith.constant 0 : index
    %133 = vector.load %arg11[%c0_48, %c0_49] : memref<64x32xbf16, #tpu.memory_space<vmem>>, vector<64x32xbf16>
    %134 = arith.truncf %132 : vector<14x64xf32> to vector<14x64xbf16>
    %cst_50 = arith.constant dense<0.000000e+00> : vector<14x32xf32>
    %135 = tpu.matmul %134, %133, %cst_50 {dimension_numbers = #tpu.dot_dimension_numbers<[1], [0], [0], [1], [0, 0, 1, 1], [], []>} : vector<14x64xbf16>, vector<64x32xbf16>, vector<14x32xf32> -> vector<14x32xf32>
    %136 = arith.addf %124, %135 : vector<14x32xf32>
    %c0_51 = arith.constant 0 : index
    %c0_52 = arith.constant 0 : index
    %137 = vector.load %arg12[%c0_51, %c0_52] : memref<1x32xf32, #tpu.memory_space<vmem>>, vector<1x32xf32>
    %138 = vector.broadcast %137 : vector<1x32xf32> to vector<14x32xf32>
    %139 = arith.addf %136, %138 : vector<14x32xf32>
    %c0_53 = arith.constant 0 : index
    %c0_54 = arith.constant 0 : index
    %140 = vector.load %arg13[%c0_53, %c0_54] : memref<32x128xbf16, #tpu.memory_space<vmem>>, vector<32x128xbf16>
    %141 = arith.truncf %139 : vector<14x32xf32> to vector<14x32xbf16>
    %cst_55 = arith.constant dense<0.000000e+00> : vector<14x128xf32>
    %142 = tpu.matmul %141, %140, %cst_55 {dimension_numbers = #tpu.dot_dimension_numbers<[1], [0], [0], [1], [0, 0, 1, 1], [], []>} : vector<14x32xbf16>, vector<32x128xbf16>, vector<14x128xf32> -> vector<14x128xf32>
    %c0_56 = arith.constant 0 : index
    %c0_57 = arith.constant 0 : index
    %143 = vector.load %arg14[%c0_56, %c0_57] : memref<1x128xf32, #tpu.memory_space<vmem>>, vector<1x128xf32>
    %144 = vector.broadcast %143 : vector<1x128xf32> to vector<14x128xf32>
    %145 = arith.addf %142, %144 : vector<14x128xf32>
    %146 = tpu.iota {dimensions = array<i32: 1>} : vector<14x128xi32>
    %c2_i32 = arith.constant 2 : i32
    %147 = vector.broadcast %c2_i32 : i32 to vector<14x128xi32>
    %148 = arith.cmpi slt, %146, %147 : vector<14x128xi32>
    %cst_58 = arith.constant 0xFF800000 : f32
    %149 = vector.broadcast %cst_58 : f32 to vector<14x128xf32>
    %150 = arith.select %148, %145, %149 : vector<14x128xi1>, vector<14x128xf32>
    %cst_59 = arith.constant dense<0xFF800000> : vector<14xf32>
    %151 = vector.multi_reduction <maximumf>, %150, %cst_59 [1] : vector<14x128xf32> to vector<14xf32>
    %152 = vector.shape_cast %151 : vector<14xf32> to vector<14x1xf32>
    %153 = vector.broadcast %152 : vector<14x1xf32> to vector<14x128xf32>
    %154 = arith.subf %150, %153 : vector<14x128xf32>
    %155 = math.exp %154 : vector<14x128xf32>
    %cst_60 = arith.constant dense<0.000000e+00> : vector<14xf32>
    %156 = vector.multi_reduction <add>, %155, %cst_60 [1] : vector<14x128xf32> to vector<14xf32>
    %157 = vector.shape_cast %156 : vector<14xf32> to vector<14x1xf32>
    %158 = math.log %157 : vector<14x1xf32>
    %159 = arith.addf %152, %158 : vector<14x1xf32>
    %160 = vector.broadcast %159 : vector<14x1xf32> to vector<14x128xf32>
    %161 = arith.subf %145, %160 : vector<14x128xf32>
    %cst_61 = arith.constant 0.000000e+00 : f32
    %162 = vector.broadcast %cst_61 : f32 to vector<14x128xf32>
    %163 = arith.maximumf %145, %162 : vector<14x128xf32>
    %164 = arith.select %148, %161, %163 : vector<14x128xi1>, vector<14x128xf32>
    %c0_62 = arith.constant 0 : index
    %c0_63 = arith.constant 0 : index
    %165 = vector.load %arg15[%c0_62, %c0_63] : memref<14x128xf32, #tpu.memory_space<vmem>>, vector<14x128xf32>
    tpu.vector_store %arg15[%c0_62, %c0_63], %164 {strides = array<i32>} : memref<14x128xf32, #tpu.memory_space<vmem>>, vector<14x128xf32>,
    return
  }
}

</mosaic_0001>

<llo_original>
// kernel: tpu_custom_call.1
$region0: #{tpu_custom_call.1}
  #allocation0 [shape = 'u32[]', space=smem, size = 0x4, offset = 0x4, fixed_abs, tag = 'smem constant byte address 0x4 - core index']
  #allocation1 [shape = 'u32[144,128]{1,0:T(1,128)}', space=vmem, size = 0x12000, scoped, tag = 'internal scratch']
  %s0 = inlined_call_operand.hbm [shape: f32[2,32], index: 0, kind: input, shape index: {}]
  %s1 = inlined_call_operand.hbm [shape: f32[2,16], index: 1, kind: input, shape index: {}]
  %s2 = inlined_call_operand.vmem [shape: f32[2,16,32], index: 2, kind: input, shape index: {}]
  %s3 = inlined_call_operand.hbm [shape: f32[7,32], index: 3, kind: input, shape index: {}]
  %s4 = inlined_call_operand.vmem [shape: f32[16,32], index: 4, kind: input, shape index: {}]
  %s5 = inlined_call_operand.hbm [shape: bf16[32,32], index: 5, kind: input, shape index: {}]
  %s6 = inlined_call_operand.vmem [shape: f32[1,32], index: 6, kind: input, shape index: {}]
  %s7 = inlined_call_operand.hbm [shape: bf16[16,32], index: 7, kind: input, shape index: {}]
  %s8 = inlined_call_operand.hbm [shape: f32[1,32], index: 8, kind: input, shape index: {}]
  %s9 = inlined_call_operand.vmem [shape: bf16[32,64], index: 9, kind: input, shape index: {}]
  %s10 = inlined_call_operand.hbm [shape: f32[1,64], index: 10, kind: input, shape index: {}]
  %s11 = inlined_call_operand.vmem [shape: bf16[64,32], index: 11, kind: input, shape index: {}]
  %s12 = inlined_call_operand.hbm [shape: f32[1,32], index: 12, kind: input, shape index: {}]
  %s13 = inlined_call_operand.vmem [shape: bf16[32,128], index: 13, kind: input, shape index: {}]
  %s14 = inlined_call_operand.vmem [shape: f32[1,128], index: 14, kind: input, shape index: {}]
  %s15 = inlined_call_operand.hbm [shape: f32[14,128], index: 15, kind: output, shape index: {}]
  %s16 = sld [smem:[#allocation0]]
  $region102: #{tpu_custom_call.1} parent=0
    _
  %s18 = ssub.s32 1, %s16
  %s19 = scalar_select 0, %s18, %s16
  $region1: #{tpu_custom_call.1} parent=0
    #allocation2 [shape = 'u8[1024]{0}', space=vmem, size = 0x400, scoped, tag = 'input window, operand 0, single buffered']
    #allocation3 [shape = 's32[1]{0}', space=sflag, size = 0x4, scoped, tag = 'scoped memory for tpu_custom_call.1']
    #allocation4 [shape = 's32[1]{0}', space=sflag, size = 0x4, scoped, tag = 'scoped memory for tpu_custom_call.1']
    #allocation5 [shape = 'u8[1024]{0}', space=vmem, size = 0x400, scoped, tag = 'input window, operand 1, single buffered']
    #allocation6 [shape = 's32[1]{0}', space=sflag, size = 0x4, scoped, tag = 'scoped memory for tpu_custom_call.1']
    #allocation7 [shape = 'u8[4096]{0}', space=vmem, size = 0x1000, scoped, tag = 'input window, operand 3, single buffered']
    #allocation8 [shape = 'u8[8192]{0}', space=vmem, size = 0x2000, scoped, tag = 'input window, operand 5, single buffered']
    #allocation9 [shape = 's32[1]{0}', space=sflag, size = 0x4, scoped, tag = 'scoped memory for tpu_custom_call.1']
    #allocation10 [shape = 'u8[4096]{0}', space=vmem, size = 0x1000, scoped, tag = 'input window, operand 7, single buffered']
    #allocation11 [shape = 'u8[512]{0}', space=vmem, size = 0x400, scoped, tag = 'input window, operand 8, single buffered']
    #allocation12 [shape = 's32[1]{0}', space=sflag, size = 0x4, scoped, tag = 'scoped memory for tpu_custom_call.1']
    #allocation13 [shape = 'u8[512]{0}', space=vmem, size = 0x400, scoped, tag = 'input window, operand 10, single buffered']
    #allocation14 [shape = 'u8[512]{0}', space=vmem, size = 0x400, scoped, tag = 'input window, operand 12, single buffered']
    #allocation15 [shape = 's32[1]{0}', space=sflag, size = 0x4, scoped, tag = 'scoped memory for tpu_custom_call.1']
    #allocation16 [shape = 'u8[8192]{0}', space=vmem, size = 0x2000, scoped, tag = 'output window, operand 0, single buffered']
    %20 = vsyncpa [#allocation3], 0
    %21 = vsyncpa [#allocation6], 0
    %22 = vsyncpa [#allocation9], 0
    %23 = vsyncpa [#allocation12], 0
    %24 = vsyncpa [#allocation15], 0
    %25 = vsyncpa [#allocation4], 0
    // Predicated region
    $region2: #{tpu_custom_call.1} parent=1 // pred_check
      _
    $region3: #{tpu_custom_call.1} parent=1 // pred_check_branch
      %27 = sbr.rel (0) target = $region5
    $region4: #{tpu_custom_call.1} parent=1 // pred_region
      %s29 = ssub.s32 32, 32
      %30 = vsyncadd [#allocation3], %s29
      %s32 = sshll.u32 [#allocation2], 4
      %s33 = int_to_ptr.vmem [resolvable:$true] %s32
      %35 = dma.hbm_to_vmem [thread:$0]  %s0, 32, %s33, [#allocation3]
    $region5: #{tpu_custom_call.1} parent=1 // pred_fallthru
      _
    // Predicated region
    $region6: #{tpu_custom_call.1} parent=1 // pred_check
      _
    $region7: #{tpu_custom_call.1} parent=1 // pred_check_branch
      %37 = sbr.rel (0) target = $region9
    $region8: #{tpu_custom_call.1} parent=1 // pred_region
      %s39 = ssub.s32 32, 32
      %40 = vsyncadd [#allocation6], %s39
      %s42 = sshll.u32 [#allocation5], 4
      %s43 = int_to_ptr.vmem [resolvable:$true] %s42
      %45 = dma.hbm_to_vmem [thread:$0]  %s1, 32, %s43, [#allocation6]
    $region9: #{tpu_custom_call.1} parent=1 // pred_fallthru
      _
    // Predicated region
    $region10: #{tpu_custom_call.1} parent=1 // pred_check
      _
    $region11: #{tpu_custom_call.1} parent=1 // pred_check_branch
      %47 = sbr.rel (0) target = $region13
    $region12: #{tpu_custom_call.1} parent=1 // pred_region
      _
    $region13: #{tpu_custom_call.1} parent=1 // pred_fallthru
      _
    // Predicated region
    $region14: #{tpu_custom_call.1} parent=1 // pred_check
      _
    $region15: #{tpu_custom_call.1} parent=1 // pred_check_branch
      %49 = sbr.rel (0) target = $region17
    $region16: #{tpu_custom_call.1} parent=1 // pred_region
      %s51 = ssub.s32 128, 128
      %52 = vsyncadd [#allocation6], %s51
      %s54 = sshll.u32 [#allocation7], 4
      %s55 = int_to_ptr.vmem [resolvable:$true] %s54
      %57 = dma.hbm_to_vmem [thread:$0]  %s3, 128, %s55, [#allocation6]
    $region17: #{tpu_custom_call.1} parent=1 // pred_fallthru
      _
    // Predicated region
    $region18: #{tpu_custom_call.1} parent=1 // pred_check
      _
    $region19: #{tpu_custom_call.1} parent=1 // pred_check_branch
      %59 = sbr.rel (0) target = $region21
    $region20: #{tpu_custom_call.1} parent=1 // pred_region
      _
    $region21: #{tpu_custom_call.1} parent=1 // pred_fallthru
      _
    // Predicated region
    $region22: #{tpu_custom_call.1} parent=1 // pred_check
      _
    $region23: #{tpu_custom_call.1} parent=1 // pred_check_branch
      %61 = sbr.rel (0) target = $region25
    $region24: #{tpu_custom_call.1} parent=1 // pred_region
      %s63 = ssub.s32 256, 256
      %64 = vsyncadd [#allocation9], %s63
      %s65 = sshll.u32 [#allocation8], 4
      %s66 = int_to_ptr.vmem [resolvable:$true] %s65
      %71 = dma.hbm_to_vmem [thread:$0]  %s5, 256, %s66, [#allocation9], 64, 64, 4
    $region25: #{tpu_custom_call.1} parent=1 // pred_fallthru
      _
    // Predicated region
    $region26: #{tpu_custom_call.1} parent=1 // pred_check
      _
    $region27: #{tpu_custom_call.1} parent=1 // pred_check_branch
      %73 = sbr.rel (0) target = $region29
    $region28: #{tpu_custom_call.1} parent=1 // pred_region
      _
    $region29: #{tpu_custom_call.1} parent=1 // pred_fallthru
      _
    // Predicated region
    $region30: #{tpu_custom_call.1} parent=1 // pred_check
      _
    $region31: #{tpu_custom_call.1} parent=1 // pred_check_branch
      %75 = sbr.rel (0) target = $region33
    $region32: #{tpu_custom_call.1} parent=1 // pred_region
      %s77 = ssub.s32 128, 128
      %78 = vsyncadd [#allocation9], %s77
      %s79 = sshll.u32 [#allocation10], 4
      %s80 = int_to_ptr.vmem [resolvable:$true] %s79
      %85 = dma.hbm_to_vmem [thread:$0]  %s7, 128, %s80, [#allocation9], 64, 64, 4
    $region33: #{tpu_custom_call.1} parent=1 // pred_fallthru
      _
    // Predicated region
    $region34: #{tpu_custom_call.1} parent=1 // pred_check
      _
    $region35: #{tpu_custom_call.1} parent=1 // pred_check_branch
      %87 = sbr.rel (0) target = $region37
    $region36: #{tpu_custom_call.1} parent=1 // pred_region
      %s89 = ssub.s32 16, 16
      %90 = vsyncadd [#allocation12], %s89
      %s92 = sshll.u32 [#allocation11], 4
      %s93 = int_to_ptr.vmem [resolvable:$true] %s92
      %95 = dma.hbm_to_vmem [thread:$0]  %s8, 16, %s93, [#allocation12]
    $region37: #{tpu_custom_call.1} parent=1 // pred_fallthru
      _
    // Predicated region
    $region38: #{tpu_custom_call.1} parent=1 // pred_check
      _
    $region39: #{tpu_custom_call.1} parent=1 // pred_check_branch
      %97 = sbr.rel (0) target = $region41
    $region40: #{tpu_custom_call.1} parent=1 // pred_region
      _
    $region41: #{tpu_custom_call.1} parent=1 // pred_fallthru
      _
    // Predicated region
    $region42: #{tpu_custom_call.1} parent=1 // pred_check
      _
    $region43: #{tpu_custom_call.1} parent=1 // pred_check_branch
      %99 = sbr.rel (0) target = $region45
    $region44: #{tpu_custom_call.1} parent=1 // pred_region
      %s101 = ssub.s32 16, 16
      %102 = vsyncadd [#allocation12], %s101
      %s104 = sshll.u32 [#allocation13], 4
      %s105 = int_to_ptr.vmem [resolvable:$true] %s104
      %107 = dma.hbm_to_vmem [thread:$0]  %s10, 16, %s105, [#allocation12]
    $region45: #{tpu_custom_call.1} parent=1 // pred_fallthru
      _
    // Predicated region
    $region46: #{tpu_custom_call.1} parent=1 // pred_check
      _
    $region47: #{tpu_custom_call.1} parent=1 // pred_check_branch
      %109 = sbr.rel (0) target = $region49
    $region48: #{tpu_custom_call.1} parent=1 // pred_region
      _
    $region49: #{tpu_custom_call.1} parent=1 // pred_fallthru
      _
    // Predicated region
    $region50: #{tpu_custom_call.1} parent=1 // pred_check
      _
    $region51: #{tpu_custom_call.1} parent=1 // pred_check_branch
      %111 = sbr.rel (0) target = $region53
    $region52: #{tpu_custom_call.1} parent=1 // pred_region
      %s113 = ssub.s32 16, 16
      %114 = vsyncadd [#allocation15], %s113
      %s116 = sshll.u32 [#allocation14], 4
      %s117 = int_to_ptr.vmem [resolvable:$true] %s116
      %119 = dma.hbm_to_vmem [thread:$0]  %s12, 16, %s117, [#allocation15]
    $region53: #{tpu_custom_call.1} parent=1 // pred_fallthru
      _
    // Predicated region
    $region54: #{tpu_custom_call.1} parent=1 // pred_check
      _
    $region55: #{tpu_custom_call.1} parent=1 // pred_check_branch
      %121 = sbr.rel (0) target = $region57
    $region56: #{tpu_custom_call.1} parent=1 // pred_region
      _
    $region57: #{tpu_custom_call.1} parent=1 // pred_fallthru
      _
    // Predicated region
    $region58: #{tpu_custom_call.1} parent=1 // pred_check
      _
    $region59: #{tpu_custom_call.1} parent=1 // pred_check_branch
      %123 = sbr.rel (0) target = $region61
    $region60: #{tpu_custom_call.1} parent=1 // pred_region
      _
    $region61: #{tpu_custom_call.1} parent=1 // pred_fallthru
      _
    // Predicated region
    $region62: #{tpu_custom_call.1} parent=1 // pred_check
      _
    $region63: #{tpu_custom_call.1} parent=1 // pred_check_branch
      %125 = sbr.rel (0) target = $region65
    $region64: #{tpu_custom_call.1} parent=1 // pred_region
      %126 = dma.done [#allocation3], 32
    $region65: #{tpu_custom_call.1} parent=1 // pred_fallthru
      _
    // Predicated region
    $region66: #{tpu_custom_call.1} parent=1 // pred_check
      _
    $region67: #{tpu_custom_call.1} parent=1 // pred_check_branch
      %128 = sbr.rel (0) target = $region69
    $region68: #{tpu_custom_call.1} parent=1 // pred_region
      %129 = dma.done [#allocation6], 32
    $region69: #{tpu_custom_call.1} parent=1 // pred_fallthru
      _
    // Predicated region
    $region70: #{tpu_custom_call.1} parent=1 // pred_check
      _
    $region71: #{tpu_custom_call.1} parent=1 // pred_check_branch
      %131 = sbr.rel (0) target = $region73
    $region72: #{tpu_custom_call.1} parent=1 // pred_region
      %132 = dma.done [#allocation6], 128
    $region73: #{tpu_custom_call.1} parent=1 // pred_fallthru
      _
    // Predicated region
    $region74: #{tpu_custom_call.1} parent=1 // pred_check
      _
    $region75: #{tpu_custom_call.1} parent=1 // pred_check_branch
      %134 = sbr.rel (0) target = $region77
    $region76: #{tpu_custom_call.1} parent=1 // pred_region
      %135 = dma.done [#allocation9], 256
    $region77: #{tpu_custom_call.1} parent=1 // pred_fallthru
      _
    // Predicated region
    $region78: #{tpu_custom_call.1} parent=1 // pred_check
      _
    $region79: #{tpu_custom_call.1} parent=1 // pred_check_branch
      %137 = sbr.rel (0) target = $region81
    $region80: #{tpu_custom_call.1} parent=1 // pred_region
      %138 = dma.done [#allocation9], 128
    $region81: #{tpu_custom_call.1} parent=1 // pred_fallthru
      _
    // Predicated region
    $region82: #{tpu_custom_call.1} parent=1 // pred_check
      _
    $region83: #{tpu_custom_call.1} parent=1 // pred_check_branch
      %140 = sbr.rel (0) target = $region85
    $region84: #{tpu_custom_call.1} parent=1 // pred_region
      %141 = dma.done [#allocation12], 16
    $region85: #{tpu_custom_call.1} parent=1 // pred_fallthru
      _
    // Predicated region
    $region86: #{tpu_custom_call.1} parent=1 // pred_check
      _
    $region87: #{tpu_custom_call.1} parent=1 // pred_check_branch
      %143 = sbr.rel (0) target = $region89
    $region88: #{tpu_custom_call.1} parent=1 // pred_region
      %144 = dma.done [#allocation12], 16
    $region89: #{tpu_custom_call.1} parent=1 // pred_fallthru
      _
    // Predicated region
    $region90: #{tpu_custom_call.1} parent=1 // pred_check
      _
    $region91: #{tpu_custom_call.1} parent=1 // pred_check_branch
      %146 = sbr.rel (0) target = $region93
    $region92: #{tpu_custom_call.1} parent=1 // pred_region
      %147 = dma.done [#allocation15], 16
    $region93: #{tpu_custom_call.1} parent=1 // pred_fallthru
      _
    %v149 = vld [vmem:[#allocation2] sm:$0x3]
    %v150 = vld [vmem:[#allocation8] sm:$0xf]
    %v151 = vld [vmem:[#allocation8 + $0x4] sm:$0xf]
    %v152 = vld [vmem:[#allocation8 + $0x8] sm:$0xf]
    %v153 = vld [vmem:[#allocation8 + $0xc] sm:$0xf]
    %v154 = vpack.c.bf16 %v149, %v149
    %v155 = vld [vmem:[%s6] sm:$0x1]
    %v157 = vlaneseq
    %v158 = vshrl.u32 %v157, 7
    %v159 = vsub.s32 0, %v158
    %v160 = vrot.slane %v155, %v159
    %v166 = vunpack.c.l.b16 %v150
    %v167 = vunpack.c.l.b16 %v151
    %v168 = vunpack.c.l.b16 %v152
    %v169 = vunpack.c.l.b16 %v153
    %v170 = vpack.c.b16 %v167, %v166
    %v171 = vpack.c.b16 %v169, %v168
    %vm174 = vcmask 261120
    %v176 = vsel %vm174, %v154, 0
    %178 = vmatprep.subr.bf16.mxu0 0
    %179 = vmatpush1.bf16.msra.mxu0 %v170
    %180 = vmatprep.subr.bf16.mxu0 0
    %181 = vmatpush1.bf16.msra.mxu0 %v171
    %182 = vmatprep.subr.bf16.mxu0 0
    %183 = vmatpush1.bf16.msra.mxu0 0
    %184 = vmatprep.subr.bf16.mxu0 0
    %185 = vmatpush1.bf16.msra.mxu0 0
    %186 = vmatprep.subr.bf16.mxu0 0
    %187 = vmatpush1.bf16.msra.mxu0 0
    %188 = vmatprep.subr.bf16.mxu0 0
    %189 = vmatpush1.bf16.msra.mxu0 0
    %190 = vmatprep.subr.bf16.mxu0 0
    %191 = vmatpush1.bf16.msra.mxu0 0
    %192 = vmatprep.subr.bf16.mxu0 0
    %193 = vmatpush1.bf16.msra.mxu0 0
    %194 = vmatprep.subr.bf16.mxu0 0
    %195 = vmatpush1.bf16.msra.mxu0 0
    %196 = vmatprep.subr.bf16.mxu0 0
    %197 = vmatpush1.bf16.msra.mxu0 0
    %198 = vmatprep.subr.bf16.mxu0 0
    %199 = vmatpush1.bf16.msra.mxu0 0
    %200 = vmatprep.subr.bf16.mxu0 0
    %201 = vmatpush1.bf16.msra.mxu0 0
    %202 = vmatprep.subr.bf16.mxu0 0
    %203 = vmatpush1.bf16.msra.mxu0 0
    %204 = vmatprep.subr.bf16.mxu0 0
    %205 = vmatpush1.bf16.msra.mxu0 0
    %206 = vmatprep.subr.bf16.mxu0 0
    %207 = vmatpush1.bf16.msra.mxu0 0
    %208 = vmatprep.subr.bf16.mxu0 0
    %209 = vmatpush1.bf16.msra.mxu0 0
    %210 = vmatprep.mubr.bf16.mxu0 0
    %211 = vmatmul.mubr.bf16.gmra.mrb[0].mxu0 %v176
    %v212 = vpop.f32.mrb[0].mxu0
    %v213 = vadd.f32 %v160, %v212
    %v214 = vpop.f32.mrb[0].mxu0
    %v215 = vpop.f32.mrb[0].mxu0
    %v216 = vpop.f32.mrb[0].mxu0
    %217 = vdwg.mxu0
    %v218 = vld [vmem:[#allocation5] sm:$0x3]
    %v219 = vld [vmem:[#allocation10] sm:$0xf]
    %v220 = vld [vmem:[#allocation10 + $0x4] sm:$0xf]
    %v221 = vpack.c.bf16 %v218, %v218
    %v222 = vld [vmem:[#allocation11] sm:$0x1]
    %v224 = vlaneseq
    %v225 = vshrl.u32 %v224, 7
    %v226 = vsub.s32 0, %v225
    %v227 = vrot.slane %v222, %v226
    %v231 = vunpack.c.l.b16 %v219
    %v232 = vunpack.c.l.b16 %v220
    %v233 = vpack.c.b16 %v232, %v231
    %vm235 = vcmask 130048
    %v237 = vsel %vm235, %v221, 0
    %239 = vmatprep.subr.bf16.mxu0 0
    %240 = vmatpush1.bf16.msra.mxu0 %v233
    %241 = vmatprep.subr.bf16.mxu0 0
    %242 = vmatpush1.bf16.msra.mxu0 0
    %243 = vmatprep.subr.bf16.mxu0 0
    %244 = vmatpush1.bf16.msra.mxu0 0
    %245 = vmatprep.subr.bf16.mxu0 0
    %246 = vmatpush1.bf16.msra.mxu0 0
    %247 = vmatprep.subr.bf16.mxu0 0
    %248 = vmatpush1.bf16.msra.mxu0 0
    %249 = vmatprep.subr.bf16.mxu0 0
    %250 = vmatpush1.bf16.msra.mxu0 0
    %251 = vmatprep.subr.bf16.mxu0 0
    %252 = vmatpush1.bf16.msra.mxu0 0
    %253 = vmatprep.subr.bf16.mxu0 0
    %254 = vmatpush1.bf16.msra.mxu0 0
    %255 = vmatprep.subr.bf16.mxu0 0
    %256 = vmatpush1.bf16.msra.mxu0 0
    %257 = vmatprep.subr.bf16.mxu0 0
    %258 = vmatpush1.bf16.msra.mxu0 0
    %259 = vmatprep.subr.bf16.mxu0 0
    %260 = vmatpush1.bf16.msra.mxu0 0
    %261 = vmatprep.subr.bf16.mxu0 0
    %262 = vmatpush1.bf16.msra.mxu0 0
    %263 = vmatprep.subr.bf16.mxu0 0
    %264 = vmatpush1.bf16.msra.mxu0 0
    %265 = vmatprep.subr.bf16.mxu0 0
    %266 = vmatpush1.bf16.msra.mxu0 0
    %267 = vmatprep.subr.bf16.mxu0 0
    %268 = vmatpush1.bf16.msra.mxu0 0
    %269 = vmatprep.subr.bf16.mxu0 0
    %270 = vmatpush1.bf16.msra.mxu0 0
    %271 = vmatprep.mubr.bf16.mxu0 0
    %272 = vmatmul.mubr.bf16.gmra.mrb[0].mxu0 %v237
    %v273 = vpop.f32.mrb[0].mxu0
    %v274 = vadd.f32 %v227, %v273
    %v275 = vpop.f32.mrb[0].mxu0
    %v276 = vpop.f32.mrb[0].mxu0
    %v277 = vpop.f32.mrb[0].mxu0
    %278 = vdwg.mxu0
    %v279 = vld [vmem:[#allocation7] sm:$0x7f]
    %v280 = vld [vmem:[%s4] sm:$0xff]
    %v281 = vld [vmem:[%s4 + $0x8] sm:$0xff]
    %v282 = vld [vmem:[%s2] sm:$0xff]
    %v283 = vld [vmem:[%s2 + $0x8] sm:$0xff]
    %v284 = vld [vmem:[%s2 + $0x10] sm:$0xff]
    %v285 = vld [vmem:[%s2 + $0x18] sm:$0xff]
    %v286 = vlaneseq
    %v287 = vshrl.u32 %v286, 7
    %vm288 = vcmp.eq.s32.totalorder %v287, 0
    %v289 = vlaneseq
    %v290 = vshrl.u32 %v289, 7
    %v291 = vsub.s32 0, %v290
    %v292 = vrot.slane %v213, %v291
    %v293 = vsel %vm288, %v292, 0.0
    %v294 = vlaneseq
    %v295 = vshrl.u32 %v294, 7
    %v296 = vsub.s32 0, %v295
    %v297 = vrot.slane %v274, %v296
    %v298 = vadd.f32 %v293, %v297
    %v299 = vadd.f32 %v298, %v279
    %v300 = vpack.c.bf16 %v299, %v299
    %v302 = vsel %vm174, %v300, 0
    %304 = vmatprep.subr.bf16.mxu0 0
    %305 = vmatpush1.bf16.xpose.msra.mxu0 %v302
    %306 = vmatprep.subr.bf16.mxu0 0
    %307 = vmatpush1.bf16.xpose.msra.mxu0 0
    %308 = vmatprep.subr.bf16.mxu0 0
    %309 = vmatpush1.bf16.xpose.msra.mxu0 0
    %310 = vmatprep.subr.bf16.mxu0 0
    %311 = vmatpush1.bf16.xpose.msra.mxu0 0
    %312 = vmatprep.subr.bf16.mxu0 0
    %313 = vmatpush1.bf16.xpose.msra.mxu0 0
    %314 = vmatprep.subr.bf16.mxu0 0
    %315 = vmatpush1.bf16.xpose.msra.mxu0 0
    %316 = vmatprep.subr.bf16.mxu0 0
    %317 = vmatpush1.bf16.xpose.msra.mxu0 0
    %318 = vmatprep.subr.bf16.mxu0 0
    %319 = vmatpush1.bf16.xpose.msra.mxu0 0
    %320 = vmatprep.subr.bf16.mxu0 0
    %321 = vmatpush1.bf16.xpose.msra.mxu0 0
    %322 = vmatprep.subr.bf16.mxu0 0
    %323 = vmatpush1.bf16.xpose.msra.mxu0 0
    %324 = vmatprep.subr.bf16.mxu0 0
    %325 = vmatpush1.bf16.xpose.msra.mxu0 0
    %326 = vmatprep.subr.bf16.mxu0 0
    %327 = vmatpush1.bf16.xpose.msra.mxu0 0
    %328 = vmatprep.subr.bf16.mxu0 0
    %329 = vmatpush1.bf16.xpose.msra.mxu0 0
    %330 = vmatprep.subr.bf16.mxu0 0
    %331 = vmatpush1.bf16.xpose.msra.mxu0 0
    %332 = vmatprep.subr.bf16.mxu0 0
    %333 = vmatpush1.bf16.xpose.msra.mxu0 0
    %334 = vmatprep.subr.bf16.mxu0 0
    %335 = vmatpush1.bf16.xpose.msra.mxu0 0
    %336 = vmatprep.mubr.bf16.mxu0 0
    %337 = vmatmul.mubr.bf16.gmra.mrb[0].mxu0 %v302
    %v338 = vpop.f32.mrb[0].mxu0
    %v339 = vadd.f32 0.0, %v338
    %v340 = vpop.f32.mrb[0].mxu0
    %v341 = vpop.f32.mrb[0].mxu0
    %v342 = vpop.f32.mrb[0].mxu0
    %343 = vdwg.mxu0
    %v344 = vmul.f32 %v339, 0.17677669
    %vm345 = vcmask 55296
    %v346 = vsel %vm345, %v344, -inf
    %347 = vmax.xlane.f32.xlu0 %v346
    %v348 = vpop.xlane.xlu0 %347
    %v349 = vsub.f32 %v344, %v348
    %v350 = vmul.f32 %v349, 1.442695
    %v351 = vpow.pop %v350
    %v352 = vsel %vm345, %v351, 0.0
    %353 = vadd.xlane.f32.xlu0 %v352
    %v354 = vpop.xlane.xlu0 %353
    %v355 = vrcp.pop %v354
    %v356 = vmul.f32 %v351, %v355
    %v357 = vpack.c.bf16 %v356, %v356
    %v358 = vpack.c.bf16 %v298, %v298
    %vm359 = vcmask 56320
    %v361 = vsel %vm359, %v357, 0
    %vm363 = vcmask 1042432
    %vm364 = vcmask 1043456
    %v365 = vsel %vm363, 4294967295, 65535
    %v366 = vsel %vm364, %v365, 0
    %v368 = vand.u32 %v358, %v366
    %370 = vmatprep.subr.bf16.mxu0 0
    %371 = vmatpush1.bf16.msra.mxu0 %v368
    %372 = vmatprep.subr.bf16.mxu0 0
    %373 = vmatpush1.bf16.msra.mxu0 0
    %374 = vmatprep.subr.bf16.mxu0 0
    %375 = vmatpush1.bf16.msra.mxu0 0
    %376 = vmatprep.subr.bf16.mxu0 0
    %377 = vmatpush1.bf16.msra.mxu0 0
    %378 = vmatprep.subr.bf16.mxu0 0
    %379 = vmatpush1.bf16.msra.mxu0 0
    %380 = vmatprep.subr.bf16.mxu0 0
    %381 = vmatpush1.bf16.msra.mxu0 0
    %382 = vmatprep.subr.bf16.mxu0 0
    %383 = vmatpush1.bf16.msra.mxu0 0
    %384 = vmatprep.subr.bf16.mxu0 0
    %385 = vmatpush1.bf16.msra.mxu0 0
    %386 = vmatprep.subr.bf16.mxu0 0
    %387 = vmatpush1.bf16.msra.mxu0 0
    %388 = vmatprep.subr.bf16.mxu0 0
    %389 = vmatpush1.bf16.msra.mxu0 0
    %390 = vmatprep.subr.bf16.mxu0 0
    %391 = vmatpush1.bf16.msra.mxu0 0
    %392 = vmatprep.subr.bf16.mxu0 0
    %393 = vmatpush1.bf16.msra.mxu0 0
    %394 = vmatprep.subr.bf16.mxu0 0
    %395 = vmatpush1.bf16.msra.mxu0 0
    %396 = vmatprep.subr.bf16.mxu0 0
    %397 = vmatpush1.bf16.msra.mxu0 0
    %398 = vmatprep.subr.bf16.mxu0 0
    %399 = vmatpush1.bf16.msra.mxu0 0
    %400 = vmatprep.subr.bf16.mxu0 0
    %401 = vmatpush1.bf16.msra.mxu0 0
    %402 = vmatprep.mubr.bf16.mxu0 0
    %403 = vmatmul.mubr.bf16.gmra.mrb[0].mxu0 %v361
    %v404 = vpop.f32.mrb[0].mxu0
    %v405 = vadd.f32 0.0, %v404
    %v406 = vpop.f32.mrb[0].mxu0
    %v407 = vpop.f32.mrb[0].mxu0
    %v408 = vpop.f32.mrb[0].mxu0
    %409 = vdwg.mxu0
    %v410 = vadd.f32 %v298, %v405
    %v411 = vadd.f32 %v410, %v279
    %v412 = vadd.f32 %v282, %v280
    %v413 = vadd.f32 %v283, %v281
    %v414 = vpack.c.bf16 %v411, %v411
    %v415 = vpack.c.bf16 %v413, %v412
    %v417 = vsel %vm174, %v414, 0
    %v420 = vsel %vm174, %v415, 0
    %422 = vmatprep.subr.bf16.mxu0 0
    %423 = vmatpush1.bf16.xpose.msra.mxu0 %v420
    %424 = vmatprep.subr.bf16.mxu0 0
    %425 = vmatpush1.bf16.xpose.msra.mxu0 0
    %426 = vmatprep.subr.bf16.mxu0 0
    %427 = vmatpush1.bf16.xpose.msra.mxu0 0
    %428 = vmatprep.subr.bf16.mxu0 0
    %429 = vmatpush1.bf16.xpose.msra.mxu0 0
    %430 = vmatprep.subr.bf16.mxu0 0
    %431 = vmatpush1.bf16.xpose.msra.mxu0 0
    %432 = vmatprep.subr.bf16.mxu0 0
    %433 = vmatpush1.bf16.xpose.msra.mxu0 0
    %434 = vmatprep.subr.bf16.mxu0 0
    %435 = vmatpush1.bf16.xpose.msra.mxu0 0
    %436 = vmatprep.subr.bf16.mxu0 0
    %437 = vmatpush1.bf16.xpose.msra.mxu0 0
    %438 = vmatprep.subr.bf16.mxu0 0
    %439 = vmatpush1.bf16.xpose.msra.mxu0 0
    %440 = vmatprep.subr.bf16.mxu0 0
    %441 = vmatpush1.bf16.xpose.msra.mxu0 0
    %442 = vmatprep.subr.bf16.mxu0 0
    %443 = vmatpush1.bf16.xpose.msra.mxu0 0
    %444 = vmatprep.subr.bf16.mxu0 0
    %445 = vmatpush1.bf16.xpose.msra.mxu0 0
    %446 = vmatprep.subr.bf16.mxu0 0
    %447 = vmatpush1.bf16.xpose.msra.mxu0 0
    %448 = vmatprep.subr.bf16.mxu0 0
    %449 = vmatpush1.bf16.xpose.msra.mxu0 0
    %450 = vmatprep.subr.bf16.mxu0 0
    %451 = vmatpush1.bf16.xpose.msra.mxu0 0
    %452 = vmatprep.subr.bf16.mxu0 0
    %453 = vmatpush1.bf16.xpose.msra.mxu0 0
    %454 = vmatprep.mubr.bf16.mxu0 0
    %455 = vmatmul.mubr.bf16.gmra.mrb[0].mxu0 %v417
    %v456 = vpop.f32.mrb[0].mxu0
    %v457 = vadd.f32 0.0, %v456
    %v458 = vpop.f32.mrb[0].mxu0
    %v459 = vpop.f32.mrb[0].mxu0
    %v460 = vpop.f32.mrb[0].mxu0
    %461 = vdwg.mxu0
    %v462 = vmul.f32 %v457, 0.17677669
    %vm463 = vcmask 129024
    %v464 = vsel %vm463, %v462, -inf
    %465 = vmax.xlane.f32.xlu0 %v464
    %v466 = vpop.xlane.xlu0 %465
    %v467 = vsub.f32 %v462, %v466
    %v468 = vmul.f32 %v467, 1.442695
    %v469 = vpow.pop %v468
    %v470 = vsel %vm463, %v469, 0.0
    %471 = vadd.xlane.f32.xlu0 %v470
    %v472 = vpop.xlane.xlu0 %471
    %v473 = vrcp.pop %v472
    %v474 = vmul.f32 %v469, %v473
    %v475 = vpack.c.bf16 %v474, %v474
    %v476 = vpack.c.bf16 %v283, %v282
    %v478 = vsel %vm235, %v475, 0
    %480 = vmatprep.subr.bf16.mxu0 0
    %481 = vmatpush1.bf16.msra.mxu0 %v476
    %482 = vmatprep.subr.bf16.mxu0 0
    %483 = vmatpush1.bf16.msra.mxu0 0
    %484 = vmatprep.subr.bf16.mxu0 0
    %485 = vmatpush1.bf16.msra.mxu0 0
    %486 = vmatprep.subr.bf16.mxu0 0
    %487 = vmatpush1.bf16.msra.mxu0 0
    %488 = vmatprep.subr.bf16.mxu0 0
    %489 = vmatpush1.bf16.msra.mxu0 0
    %490 = vmatprep.subr.bf16.mxu0 0
    %491 = vmatpush1.bf16.msra.mxu0 0
    %492 = vmatprep.subr.bf16.mxu0 0
    %493 = vmatpush1.bf16.msra.mxu0 0
    %494 = vmatprep.subr.bf16.mxu0 0
    %495 = vmatpush1.bf16.msra.mxu0 0
    %496 = vmatprep.subr.bf16.mxu0 0
    %497 = vmatpush1.bf16.msra.mxu0 0
    %498 = vmatprep.subr.bf16.mxu0 0
    %499 = vmatpush1.bf16.msra.mxu0 0
    %500 = vmatprep.subr.bf16.mxu0 0
    %501 = vmatpush1.bf16.msra.mxu0 0
    %502 = vmatprep.subr.bf16.mxu0 0
    %503 = vmatpush1.bf16.msra.mxu0 0
    %504 = vmatprep.subr.bf16.mxu0 0
    %505 = vmatpush1.bf16.msra.mxu0 0
    %506 = vmatprep.subr.bf16.mxu0 0
    %507 = vmatpush1.bf16.msra.mxu0 0
    %508 = vmatprep.subr.bf16.mxu0 0
    %509 = vmatpush1.bf16.msra.mxu0 0
    %510 = vmatprep.subr.bf16.mxu0 0
    %511 = vmatpush1.bf16.msra.mxu0 0
    %512 = vmatprep.mubr.bf16.mxu0 0
    %513 = vmatmul.mubr.bf16.gmra.mrb[0].mxu0 %v478
    %v514 = vpop.f32.mrb[0].mxu0
    %v515 = vadd.f32 0.0, %v514
    %v516 = vpop.f32.mrb[0].mxu0
    %v517 = vpop.f32.mrb[0].mxu0
    %v518 = vpop.f32.mrb[0].mxu0
    %519 = vdwg.mxu0
    %v520 = vadd.f32 %v410, %v515
    %v521 = vlaneseq
    %v522 = vshrl.u32 %v521, 7
    %v523 = vsub.s32 1, %v522
    %v524 = vrot.slane %v213, %v523
    %v525 = vsel %vm288, %v524, 0.0
    %v526 = vlaneseq
    %v527 = vshrl.u32 %v526, 7
    %v528 = vsub.s32 1, %v527
    %v529 = vrot.slane %v274, %v528
    %v530 = vadd.f32 %v525, %v529
    %v531 = vadd.f32 %v530, %v279
    %v532 = vpack.c.bf16 %v531, %v531
    %v534 = vsel %vm174, %v532, 0
    %536 = vmatprep.subr.bf16.mxu0 0
    %537 = vmatpush1.bf16.xpose.msra.mxu0 %v534
    %538 = vmatprep.subr.bf16.mxu0 0
    %539 = vmatpush1.bf16.xpose.msra.mxu0 0
    %540 = vmatprep.subr.bf16.mxu0 0
    %541 = vmatpush1.bf16.xpose.msra.mxu0 0
    %542 = vmatprep.subr.bf16.mxu0 0
    %543 = vmatpush1.bf16.xpose.msra.mxu0 0
    %544 = vmatprep.subr.bf16.mxu0 0
    %545 = vmatpush1.bf16.xpose.msra.mxu0 0
    %546 = vmatprep.subr.bf16.mxu0 0
    %547 = vmatpush1.bf16.xpose.msra.mxu0 0
    %548 = vmatprep.subr.bf16.mxu0 0
    %549 = vmatpush1.bf16.xpose.msra.mxu0 0
    %550 = vmatprep.subr.bf16.mxu0 0
    %551 = vmatpush1.bf16.xpose.msra.mxu0 0
    %552 = vmatprep.subr.bf16.mxu0 0
    %553 = vmatpush1.bf16.xpose.msra.mxu0 0
    %554 = vmatprep.subr.bf16.mxu0 0
    %555 = vmatpush1.bf16.xpose.msra.mxu0 0
    %556 = vmatprep.subr.bf16.mxu0 0
    %557 = vmatpush1.bf16.xpose.msra.mxu0 0
    %558 = vmatprep.subr.bf16.mxu0 0
    %559 = vmatpush1.bf16.xpose.msra.mxu0 0
    %560 = vmatprep.subr.bf16.mxu0 0
    %561 = vmatpush1.bf16.xpose.msra.mxu0 0
    %562 = vmatprep.subr.bf16.mxu0 0
    %563 = vmatpush1.bf16.xpose.msra.mxu0 0
    %564 = vmatprep.subr.bf16.mxu0 0
    %565 = vmatpush1.bf16.xpose.msra.mxu0 0
    %566 = vmatprep.subr.bf16.mxu0 0
    %567 = vmatpush1.bf16.xpose.msra.mxu0 0
    %568 = vmatprep.mubr.bf16.mxu0 0
    %569 = vmatmul.mubr.bf16.gmra.mrb[0].mxu0 %v534
    %v570 = vpop.f32.mrb[0].mxu0
    %v571 = vadd.f32 0.0, %v570
    %v572 = vpop.f32.mrb[0].mxu0
    %v573 = vpop.f32.mrb[0].mxu0
    %v574 = vpop.f32.mrb[0].mxu0
    %575 = vdwg.mxu0
    %v576 = vmul.f32 %v571, 0.17677669
    %v577 = vsel %vm345, %v576, -inf
    %578 = vmax.xlane.f32.xlu0 %v577
    %v579 = vpop.xlane.xlu0 %578
    %v580 = vsub.f32 %v576, %v579
    %v581 = vmul.f32 %v580, 1.442695
    %v582 = vpow.pop %v581
    %v583 = vsel %vm345, %v582, 0.0
    %584 = vadd.xlane.f32.xlu0 %v583
    %v585 = vpop.xlane.xlu0 %584
    %v586 = vrcp.pop %v585
    %v587 = vmul.f32 %v582, %v586
    %v588 = vpack.c.bf16 %v587, %v587
    %v589 = vpack.c.bf16 %v530, %v530
    %v591 = vsel %vm359, %v588, 0
    %v594 = vand.u32 %v589, %v366
    %596 = vmatprep.subr.bf16.mxu0 0
    %597 = vmatpush1.bf16.msra.mxu0 %v594
    %598 = vmatprep.subr.bf16.mxu0 0
    %599 = vmatpush1.bf16.msra.mxu0 0
    %600 = vmatprep.subr.bf16.mxu0 0
    %601 = vmatpush1.bf16.msra.mxu0 0
    %602 = vmatprep.subr.bf16.mxu0 0
    %603 = vmatpush1.bf16.msra.mxu0 0
    %604 = vmatprep.subr.bf16.mxu0 0
    %605 = vmatpush1.bf16.msra.mxu0 0
    %606 = vmatprep.subr.bf16.mxu0 0
    %607 = vmatpush1.bf16.msra.mxu0 0
    %608 = vmatprep.subr.bf16.mxu0 0
    %609 = vmatpush1.bf16.msra.mxu0 0
    %610 = vmatprep.subr.bf16.mxu0 0
    %611 = vmatpush1.bf16.msra.mxu0 0
    %612 = vmatprep.subr.bf16.mxu0 0
    %613 = vmatpush1.bf16.msra.mxu0 0
    %614 = vmatprep.subr.bf16.mxu0 0
    %615 = vmatpush1.bf16.msra.mxu0 0
    %616 = vmatprep.subr.bf16.mxu0 0
    %617 = vmatpush1.bf16.msra.mxu0 0
    %618 = vmatprep.subr.bf16.mxu0 0
    %619 = vmatpush1.bf16.msra.mxu0 0
    %620 = vmatprep.subr.bf16.mxu0 0
    %621 = vmatpush1.bf16.msra.mxu0 0
    %622 = vmatprep.subr.bf16.mxu0 0
    %623 = vmatpush1.bf16.msra.mxu0 0
    %624 = vmatprep.subr.bf16.mxu0 0
    %625 = vmatpush1.bf16.msra.mxu0 0
    %626 = vmatprep.subr.bf16.mxu0 0
    %627 = vmatpush1.bf16.msra.mxu0 0
    %628 = vmatprep.mubr.bf16.mxu0 0
    %629 = vmatmul.mubr.bf16.gmra.mrb[0].mxu0 %v591
    %v630 = vpop.f32.mrb[0].mxu0
    %v631 = vadd.f32 0.0, %v630
    %v632 = vpop.f32.mrb[0].mxu0
    %v633 = vpop.f32.mrb[0].mxu0
    %v634 = vpop.f32.mrb[0].mxu0
    %635 = vdwg.mxu0
    %v636 = vadd.f32 %v530, %v631
    %v637 = vadd.f32 %v636, %v279
    %v638 = vadd.f32 %v284, %v280
    %v639 = vadd.f32 %v285, %v281
    %v640 = vpack.c.bf16 %v637, %v637
    %v641 = vpack.c.bf16 %v639, %v638
    %v643 = vsel %vm174, %v640, 0
    %v646 = vsel %vm174, %v641, 0
    %648 = vmatprep.subr.bf16.mxu0 0
    %649 = vmatpush1.bf16.xpose.msra.mxu0 %v646
    %650 = vmatprep.subr.bf16.mxu0 0
    %651 = vmatpush1.bf16.xpose.msra.mxu0 0
    %652 = vmatprep.subr.bf16.mxu0 0
    %653 = vmatpush1.bf16.xpose.msra.mxu0 0
    %654 = vmatprep.subr.bf16.mxu0 0
    %655 = vmatpush1.bf16.xpose.msra.mxu0 0
    %656 = vmatprep.subr.bf16.mxu0 0
    %657 = vmatpush1.bf16.xpose.msra.mxu0 0
    %658 = vmatprep.subr.bf16.mxu0 0
    %659 = vmatpush1.bf16.xpose.msra.mxu0 0
    %660 = vmatprep.subr.bf16.mxu0 0
    %661 = vmatpush1.bf16.xpose.msra.mxu0 0
    %662 = vmatprep.subr.bf16.mxu0 0
    %663 = vmatpush1.bf16.xpose.msra.mxu0 0
    %664 = vmatprep.subr.bf16.mxu0 0
    %665 = vmatpush1.bf16.xpose.msra.mxu0 0
    %666 = vmatprep.subr.bf16.mxu0 0
    %667 = vmatpush1.bf16.xpose.msra.mxu0 0
    %668 = vmatprep.subr.bf16.mxu0 0
    %669 = vmatpush1.bf16.xpose.msra.mxu0 0
    %670 = vmatprep.subr.bf16.mxu0 0
    %671 = vmatpush1.bf16.xpose.msra.mxu0 0
    %672 = vmatprep.subr.bf16.mxu0 0
    %673 = vmatpush1.bf16.xpose.msra.mxu0 0
    %674 = vmatprep.subr.bf16.mxu0 0
    %675 = vmatpush1.bf16.xpose.msra.mxu0 0
    %676 = vmatprep.subr.bf16.mxu0 0
    %677 = vmatpush1.bf16.xpose.msra.mxu0 0
    %678 = vmatprep.subr.bf16.mxu0 0
    %679 = vmatpush1.bf16.xpose.msra.mxu0 0
    %680 = vmatprep.mubr.bf16.mxu0 0
    %681 = vmatmul.mubr.bf16.gmra.mrb[0].mxu0 %v643
    %v682 = vpop.f32.mrb[0].mxu0
    %v683 = vadd.f32 0.0, %v682
    %v684 = vpop.f32.mrb[0].mxu0
    %v685 = vpop.f32.mrb[0].mxu0
    %v686 = vpop.f32.mrb[0].mxu0
    %687 = vdwg.mxu0
    %v688 = vmul.f32 %v683, 0.17677669
    %v689 = vsel %vm463, %v688, -inf
    %690 = vmax.xlane.f32.xlu0 %v689
    %v691 = vpop.xlane.xlu0 %690
    %v692 = vsub.f32 %v688, %v691
    %v693 = vmul.f32 %v692, 1.442695
    %v694 = vpow.pop %v693
    %v695 = vsel %vm463, %v694, 0.0
    %696 = vadd.xlane.f32.xlu0 %v695
    %v697 = vpop.xlane.xlu0 %696
    %v698 = vrcp.pop %v697
    %v699 = vmul.f32 %v694, %v698
    %v700 = vpack.c.bf16 %v699, %v699
    %v701 = vpack.c.bf16 %v285, %v284
    %v703 = vsel %vm235, %v700, 0
    %705 = vmatprep.subr.bf16.mxu0 0
    %706 = vmatpush1.bf16.msra.mxu0 %v701
    %707 = vmatprep.subr.bf16.mxu0 0
    %708 = vmatpush1.bf16.msra.mxu0 0
    %709 = vmatprep.subr.bf16.mxu0 0
    %710 = vmatpush1.bf16.msra.mxu0 0
    %711 = vmatprep.subr.bf16.mxu0 0
    %712 = vmatpush1.bf16.msra.mxu0 0
    %713 = vmatprep.subr.bf16.mxu0 0
    %714 = vmatpush1.bf16.msra.mxu0 0
    %715 = vmatprep.subr.bf16.mxu0 0
    %716 = vmatpush1.bf16.msra.mxu0 0
    %717 = vmatprep.subr.bf16.mxu0 0
    %718 = vmatpush1.bf16.msra.mxu0 0
    %719 = vmatprep.subr.bf16.mxu0 0
    %720 = vmatpush1.bf16.msra.mxu0 0
    %721 = vmatprep.subr.bf16.mxu0 0
    %722 = vmatpush1.bf16.msra.mxu0 0
    %723 = vmatprep.subr.bf16.mxu0 0
    %724 = vmatpush1.bf16.msra.mxu0 0
    %725 = vmatprep.subr.bf16.mxu0 0
    %726 = vmatpush1.bf16.msra.mxu0 0
    %727 = vmatprep.subr.bf16.mxu0 0
    %728 = vmatpush1.bf16.msra.mxu0 0
    %729 = vmatprep.subr.bf16.mxu0 0
    %730 = vmatpush1.bf16.msra.mxu0 0
    %731 = vmatprep.subr.bf16.mxu0 0
    %732 = vmatpush1.bf16.msra.mxu0 0
    %733 = vmatprep.subr.bf16.mxu0 0
    %734 = vmatpush1.bf16.msra.mxu0 0
    %735 = vmatprep.subr.bf16.mxu0 0
    %736 = vmatpush1.bf16.msra.mxu0 0
    %737 = vmatprep.mubr.bf16.mxu0 0
    %738 = vmatmul.mubr.bf16.gmra.mrb[0].mxu0 %v703
    %v739 = vpop.f32.mrb[0].mxu0
    %v740 = vadd.f32 0.0, %v739
    %v741 = vpop.f32.mrb[0].mxu0
    %v742 = vpop.f32.mrb[0].mxu0
    %v743 = vpop.f32.mrb[0].mxu0
    %744 = vdwg.mxu0
    %v745 = vadd.f32 %v636, %v740
    %v747 = vrot.slane %v745, 1
    %vm749 = vcmask 1046528
    %v750 = vsel %vm749, %v520, %v747
    %v751 = vld [vmem:[%s9] sm:$0xf]
    %v752 = vld [vmem:[%s9 + $0x4] sm:$0xf]
    %v753 = vld [vmem:[%s9 + $0x8] sm:$0xf]
    %v754 = vld [vmem:[%s9 + $0xc] sm:$0xf]
    %v755 = vpack.c.bf16 %v747, %v750
    %v756 = vld [vmem:[#allocation13] sm:$0x1]
    %v758 = vlaneseq
    %v759 = vshrl.u32 %v758, 7
    %v760 = vsub.s32 0, %v759
    %v761 = vrot.slane %v756, %v760
    %v767 = vunpack.c.l.b16 %v751
    %v768 = vunpack.c.l.b16 %v752
    %v769 = vunpack.c.l.b16 %v753
    %v770 = vunpack.c.l.b16 %v754
    %v771 = vpack.c.b16 %v768, %v767
    %v772 = vpack.c.b16 %v770, %v769
    %v776 = vsel %vm174, %v755, 0
    %778 = vmatprep.subr.bf16.mxu0 0
    %779 = vmatpush1.bf16.msra.mxu0 %v771
    %780 = vmatprep.subr.bf16.mxu0 0
    %781 = vmatpush1.bf16.msra.mxu0 %v772
    %782 = vmatprep.subr.bf16.mxu0 0
    %783 = vmatpush1.bf16.msra.mxu0 0
    %784 = vmatprep.subr.bf16.mxu0 0
    %785 = vmatpush1.bf16.msra.mxu0 0
    %786 = vmatprep.subr.bf16.mxu0 0
    %787 = vmatpush1.bf16.msra.mxu0 0
    %788 = vmatprep.subr.bf16.mxu0 0
    %789 = vmatpush1.bf16.msra.mxu0 0
    %790 = vmatprep.subr.bf16.mxu0 0
    %791 = vmatpush1.bf16.msra.mxu0 0
    %792 = vmatprep.subr.bf16.mxu0 0
    %793 = vmatpush1.bf16.msra.mxu0 0
    %794 = vmatprep.subr.bf16.mxu0 0
    %795 = vmatpush1.bf16.msra.mxu0 0
    %796 = vmatprep.subr.bf16.mxu0 0
    %797 = vmatpush1.bf16.msra.mxu0 0
    %798 = vmatprep.subr.bf16.mxu0 0
    %799 = vmatpush1.bf16.msra.mxu0 0
    %800 = vmatprep.subr.bf16.mxu0 0
    %801 = vmatpush1.bf16.msra.mxu0 0
    %802 = vmatprep.subr.bf16.mxu0 0
    %803 = vmatpush1.bf16.msra.mxu0 0
    %804 = vmatprep.subr.bf16.mxu0 0
    %805 = vmatpush1.bf16.msra.mxu0 0
    %806 = vmatprep.subr.bf16.mxu0 0
    %807 = vmatpush1.bf16.msra.mxu0 0
    %808 = vmatprep.subr.bf16.mxu0 0
    %809 = vmatpush1.bf16.msra.mxu0 0
    %810 = vmatprep.mubr.bf16.mxu0 0
    %811 = vmatmul.mubr.bf16.gmra.mrb[0].mxu0 %v776
    %v812 = vpop.f32.mrb[0].mxu0
    %v813 = vadd.f32 %v761, %v812
    %v814 = vpop.f32.mrb[0].mxu0
    %v815 = vpop.f32.mrb[0].mxu0
    %v816 = vadd.f32 %v761, %v815
    %v817 = vpop.f32.mrb[0].mxu0
    %818 = vdwg.mxu0
    %v819 = vmax.f32 %v813, 0.0
    %v820 = vmax.f32 %v816, 0.0
    %v821 = vld [vmem:[%s11] sm:$0xf]
    %v822 = vld [vmem:[%s11 + $0x4] sm:$0xf]
    %v823 = vld [vmem:[%s11 + $0x8] sm:$0xf]
    %v824 = vld [vmem:[%s11 + $0xc] sm:$0xf]
    %v825 = vld [vmem:[%s11 + $0x10] sm:$0xf]
    %v826 = vld [vmem:[%s11 + $0x14] sm:$0xf]
    %v827 = vld [vmem:[%s11 + $0x18] sm:$0xf]
    %v828 = vld [vmem:[%s11 + $0x1c] sm:$0xf]
    %v829 = vpack.c.bf16 %v820, %v819
    %v838 = vunpack.c.l.b16 %v821
    %v839 = vunpack.c.l.b16 %v822
    %v840 = vunpack.c.l.b16 %v823
    %v841 = vunpack.c.l.b16 %v824
    %v842 = vunpack.c.l.b16 %v825
    %v843 = vunpack.c.l.b16 %v826
    %v844 = vunpack.c.l.b16 %v827
    %v845 = vunpack.c.l.b16 %v828
    %v846 = vpack.c.b16 %v839, %v838
    %v847 = vpack.c.b16 %v841, %v840
    %v848 = vpack.c.b16 %v843, %v842
    %v849 = vpack.c.b16 %v845, %v844
    %vm854 = vcmask 523264
    %v856 = vsel %vm854, %v829, 0
    %858 = vmatprep.subr.bf16.mxu0 0
    %859 = vmatpush1.bf16.msra.mxu0 %v846
    %860 = vmatprep.subr.bf16.mxu0 0
    %861 = vmatpush1.bf16.msra.mxu0 %v847
    %862 = vmatprep.subr.bf16.mxu0 0
    %863 = vmatpush1.bf16.msra.mxu0 %v848
    %864 = vmatprep.subr.bf16.mxu0 0
    %865 = vmatpush1.bf16.msra.mxu0 %v849
    %866 = vmatprep.subr.bf16.mxu0 0
    %867 = vmatpush1.bf16.msra.mxu0 0
    %868 = vmatprep.subr.bf16.mxu0 0
    %869 = vmatpush1.bf16.msra.mxu0 0
    %870 = vmatprep.subr.bf16.mxu0 0
    %871 = vmatpush1.bf16.msra.mxu0 0
    %872 = vmatprep.subr.bf16.mxu0 0
    %873 = vmatpush1.bf16.msra.mxu0 0
    %874 = vmatprep.subr.bf16.mxu0 0
    %875 = vmatpush1.bf16.msra.mxu0 0
    %876 = vmatprep.subr.bf16.mxu0 0
    %877 = vmatpush1.bf16.msra.mxu0 0
    %878 = vmatprep.subr.bf16.mxu0 0
    %879 = vmatpush1.bf16.msra.mxu0 0
    %880 = vmatprep.subr.bf16.mxu0 0
    %881 = vmatpush1.bf16.msra.mxu0 0
    %882 = vmatprep.subr.bf16.mxu0 0
    %883 = vmatpush1.bf16.msra.mxu0 0
    %884 = vmatprep.subr.bf16.mxu0 0
    %885 = vmatpush1.bf16.msra.mxu0 0
    %886 = vmatprep.subr.bf16.mxu0 0
    %887 = vmatpush1.bf16.msra.mxu0 0
    %888 = vmatprep.subr.bf16.mxu0 0
    %889 = vmatpush1.bf16.msra.mxu0 0
    %890 = vmatprep.mubr.bf16.mxu0 0
    %891 = vmatmul.mubr.bf16.gmra.mrb[0].mxu0 %v856
    %v892 = vpop.f32.mrb[0].mxu0
    %v893 = vadd.f32 0.0, %v892
    %v894 = vpop.f32.mrb[0].mxu0
    %v895 = vpop.f32.mrb[0].mxu0
    %v896 = vadd.f32 0.0, %v895
    %v897 = vpop.f32.mrb[0].mxu0
    %898 = vdwg.mxu0
    %v899 = vadd.f32 %v750, %v893
    %v900 = vadd.f32 %v747, %v896
    %v901 = vld [vmem:[#allocation14] sm:$0x1]
    %v903 = vlaneseq
    %v904 = vshrl.u32 %v903, 7
    %v905 = vsub.s32 0, %v904
    %v906 = vrot.slane %v901, %v905
    %v908 = vadd.f32 %v899, %v906
    %v909 = vadd.f32 %v900, %v906
    %v910 = vld [vmem:[%s13] sm:$0xf]
    %v911 = vld [vmem:[%s13 + $0x4] sm:$0xf]
    %v912 = vld [vmem:[%s13 + $0x8] sm:$0xf]
    %v913 = vld [vmem:[%s13 + $0xc] sm:$0xf]
    %v914 = vpack.c.bf16 %v909, %v908
    %v915 = vld [vmem:[%s14] sm:$0x1]
    %v917 = vlaneseq
    %v918 = vshrl.u32 %v917, 7
    %v919 = vsub.s32 0, %v918
    %v920 = vrot.slane %v915, %v919
    %v926 = vunpack.c.l.b16 %v910
    %v927 = vunpack.c.l.b16 %v911
    %v928 = vunpack.c.l.b16 %v912
    %v929 = vunpack.c.l.b16 %v913
    %v930 = vpack.c.b16 %v927, %v926
    %v931 = vpack.c.b16 %v929, %v928
    %v935 = vsel %vm174, %v914, 0
    %937 = vmatprep.subr.bf16.mxu0 0
    %938 = vmatpush1.bf16.msra.mxu0 %v930
    %939 = vmatprep.subr.bf16.mxu0 0
    %940 = vmatpush1.bf16.msra.mxu0 %v931
    %941 = vmatprep.subr.bf16.mxu0 0
    %942 = vmatpush1.bf16.msra.mxu0 0
    %943 = vmatprep.subr.bf16.mxu0 0
    %944 = vmatpush1.bf16.msra.mxu0 0
    %945 = vmatprep.subr.bf16.mxu0 0
    %946 = vmatpush1.bf16.msra.mxu0 0
    %947 = vmatprep.subr.bf16.mxu0 0
    %948 = vmatpush1.bf16.msra.mxu0 0
    %949 = vmatprep.subr.bf16.mxu0 0
    %950 = vmatpush1.bf16.msra.mxu0 0
    %951 = vmatprep.subr.bf16.mxu0 0
    %952 = vmatpush1.bf16.msra.mxu0 0
    %953 = vmatprep.subr.bf16.mxu0 0
    %954 = vmatpush1.bf16.msra.mxu0 0
    %955 = vmatprep.subr.bf16.mxu0 0
    %956 = vmatpush1.bf16.msra.mxu0 0
    %957 = vmatprep.subr.bf16.mxu0 0
    %958 = vmatpush1.bf16.msra.mxu0 0
    %959 = vmatprep.subr.bf16.mxu0 0
    %960 = vmatpush1.bf16.msra.mxu0 0
    %961 = vmatprep.subr.bf16.mxu0 0
    %962 = vmatpush1.bf16.msra.mxu0 0
    %963 = vmatprep.subr.bf16.mxu0 0
    %964 = vmatpush1.bf16.msra.mxu0 0
    %965 = vmatprep.subr.bf16.mxu0 0
    %966 = vmatpush1.bf16.msra.mxu0 0
    %967 = vmatprep.subr.bf16.mxu0 0
    %968 = vmatpush1.bf16.msra.mxu0 0
    %969 = vmatprep.mubr.bf16.mxu0 0
    %970 = vmatmul.mubr.bf16.gmra.mrb[0].mxu0 %v935
    %v971 = vpop.f32.mrb[0].mxu0
    %v972 = vadd.f32 %v920, %v971
    %v973 = vpop.f32.mrb[0].mxu0
    %v974 = vpop.f32.mrb[0].mxu0
    %v975 = vadd.f32 %v920, %v974
    %v976 = vpop.f32.mrb[0].mxu0
    %977 = vdwg.mxu0
    %v978 = vlaneseq
    %v979 = vand.u32 %v978, 127
    %vm980 = vcmp.lt.s32.totalorder %v979, 2
    %v981 = vsel %vm980, %v972, -inf
    %v982 = vsel %vm980, %v975, -inf
    %983 = vmax.xlane.f32.xlu0 %v981
    %v984 = vpop.xlane.xlu0 %983
    %vm985 = vcmask 1045504
    %v986 = vsel %vm985, %v982, -inf
    %987 = vmax.xlane.f32.xlu0 %v986
    %v988 = vpop.xlane.xlu0 %987
    %v989 = vsub.f32 %v981, %v984
    %v990 = vsub.f32 %v982, %v988
    %v991 = vmul.f32 %v989, 1.442695
    %v992 = vpow.pop %v991
    %v993 = vmul.f32 %v990, 1.442695
    %v994 = vpow.pop %v993
    %995 = vadd.xlane.f32.xlu0 %v992
    %v996 = vpop.xlane.xlu0 %995
    %v997 = vsel %vm985, %v994, 0.0
    %998 = vadd.xlane.f32.xlu0 %v997
    %v999 = vpop.xlane.xlu0 %998
    %v1000 = vlog2.pop %v996
    %v1001 = vmul.f32 %v1000, 0.6931472
    %v1002 = vlog2.pop %v999
    %v1003 = vmul.f32 %v1002, 0.6931472
    %v1004 = vadd.f32 %v984, %v1001
    %v1005 = vadd.f32 %v988, %v1003
    %v1006 = vsub.f32 %v972, %v1004
    %v1007 = vsub.f32 %v975, %v1005
    %v1008 = vmax.f32 %v972, 0.0
    %v1009 = vmax.f32 %v975, 0.0
    %v1010 = vsel %vm980, %v1006, %v1008
    %v1011 = vsel %vm980, %v1007, %v1009
    %1012 = vst [vmem:[#allocation16] sm:$0xff] %v1010
    %1013 = vst [vmem:[#allocation16 + $0x8] sm:$0x3f] %v1011
    // Predicated region
    $region94: #{tpu_custom_call.1} parent=1 // pred_check
      _
    $region95: #{tpu_custom_call.1} parent=1 // pred_check_branch
      %1015 = sbr.rel (0) target = $region97
    $region96: #{tpu_custom_call.1} parent=1 // pred_region
      %s1017 = ssub.s32 256, 256
      %1018 = vsyncadd [#allocation4], %s1017
      %s1019 = sshll.u32 [#allocation16], 4
      %s1020 = int_to_ptr.vmem [resolvable:$true] %s1019
      %1025 = dma.vmem_to_hbm [thread:$0]  %s1020, 256, %s15, [#allocation4], 128, 128, 8
    $region97: #{tpu_custom_call.1} parent=1 // pred_fallthru
      _
    // Predicated region
    $region98: #{tpu_custom_call.1} parent=1 // pred_check
      _
    $region99: #{tpu_custom_call.1} parent=1 // pred_check_branch
      %1027 = sbr.rel (0) target = $region101
    $region100: #{tpu_custom_call.1} parent=1 // pred_region
      %1028 = dma.done [#allocation4], 256
    $region101: #{tpu_custom_call.1} parent=1 // pred_fallthru
      _
    %1029 = vsyncpa [#allocation3], 1
    %1030 = vsyncpa [#allocation6], 1
    %1031 = vsyncpa [#allocation9], 1
    %1032 = vsyncpa [#allocation12], 1
    %1033 = vsyncpa [#allocation15], 1
    %1034 = vsyncpa [#allocation4], 1

</llo_original>
